<compile_context>
chip_gen: v5e
topology: v5e:2x2
jax: 0.10.0
libtpu: 0.0.40
codegen_flags: <defaults>
</compile_context>

<pallas_src>
import functools

import jax
import jax.numpy as jnp
import numpy as np
from jax.experimental import pallas as pl
from jax.experimental.pallas import tpu as pltpu

BN_EPS = 1e-5


# ---------------------------------------------------------------------------
# Fused Block kernel
# ---------------------------------------------------------------------------
def _block_kernel(x_ref, mask_ref, pool_ref, w_ref, gamma_ref, beta_ref,
                  b_ref, o_ref, *, n_layers):
    """Fused Block forward (single launch, activations resident in VMEM).

    x_ref     : (N*H, W*C)       input activations, lane-dense, f32
    mask_ref  : (2, N*H, 1)      0/1 row-validity masks for dy = -1 / +1
                                 (H-boundary + image-boundary zeros)
    pool_ref  : (W*C, W*C)       per-channel lane-averaging matrix
                                 (already scaled by 1/(N*H*W)), f32
    w_ref     : (L, 3*W*C, W*C)  banded conv weights, ky blocks stacked along
                                 the contraction dim, bf16
    gamma_ref : (L, 1, W*C)      BN gamma, tiled over W, f32
    beta_ref  : (L, 1, W*C)      BN beta,  tiled over W, f32
    b_ref     : (L, 1, W*C)      conv bias, tiled over W, f32
    o_ref     : (N*H, W*C)       output, f32
    """
    x = x_ref[...]
    pool = pool_ref[...]
    mask_up = mask_ref[0]          # 0 where h == 0     (no row above)
    mask_dn = mask_ref[1]          # 0 where h == H - 1 (no row below)
    nh = x.shape[0]

    h = x
    for l in range(n_layers):
        # ---- BatchNorm: training-mode batch stats (f32) --------------------
        # Row-reduce first (XLU slot), then pool lanes per channel with a tiny
        # (1, WC) x (WC, WC) matmul — not an (NH, WC) x (WC, WC) one.
        mean = jnp.dot(jnp.sum(h, axis=0, keepdims=True), pool,
                       preferred_element_type=jnp.float32)           # (1, WC)
        xc = h - mean
        var = jnp.dot(jnp.sum(xc * xc, axis=0, keepdims=True), pool,
                      preferred_element_type=jnp.float32)            # (1, WC)
        hn = xc * (gamma_ref[l] * jax.lax.rsqrt(var + BN_EPS)) + beta_ref[l]

        # ---- 3x3 conv (pad=1) -----------------------------------------------
        # dy shifts on the XLU (sublane roll) + VPU masking; masks zero both
        # the h-edges and the wrap between images in the packed N*H axis.
        sh_up = pltpu.roll(hn, shift=1, axis=0) * mask_up        # row r-1
        sh_dn = pltpu.roll(hn, shift=nh - 1, axis=0) * mask_dn   # row r+1
        # All ky taps (and all kx taps + W-boundary zeros, via the banded
        # weights) in ONE bf16 MXU matmul with K = 3*WC.
        z = jnp.concatenate([sh_up, hn, sh_dn], axis=1)          # (NH, 3*WC)
        acc = jnp.dot(z.astype(jnp.bfloat16), w_ref[l],
                      preferred_element_type=jnp.float32)        # (NH, WC)

        # ---- bias + ReLU ------------------------------------------------------
        h = jnp.maximum(acc + b_ref[l], 0.0)

    o_ref[...] = h + x             # residual add


# ---------------------------------------------------------------------------
# Wrapper-side (parameter / constant) preprocessing
# ---------------------------------------------------------------------------
def _row_masks(N, H):
    """(2, N*H, 1) 0/1 masks.

    [0] zeroes rows with h == 0     (row above is another image / padding)
    [1] zeroes rows with h == H - 1 (row below is another image / padding)
    """
    r = np.arange(N * H)
    hrow = r % H
    up = (hrow > 0).astype(np.float32)
    dn = (hrow < H - 1).astype(np.float32)
    return jnp.asarray(np.stack([up, dn])[:, :, None])


def _channel_pool_matrix(W, C, count):
    """(W*C, W*C) matrix averaging lanes that belong to the same channel."""
    j = np.arange(W * C)
    same = (j[:, None] % C) == (j[None, :] % C)
    return jnp.asarray(same.astype(np.float32) / float(count))


def _banded_weight(w9, W):
    """(9, Cin, Cout) conv taps -> (3*W*Cin, W*Cout) stacked banded matrices.

    For ky block kdy: B[kdy][wx*Cin + ci, wo*Cout + co] = w[kdy, (wx-wo)+1, ci, co]
    if |wx-wo| <= 1 else 0, so (dy-shifted rows) @ B realizes all kx taps
    including the zero padding at the W boundary.  The three ky blocks are
    stacked along the contraction dim (rows) to enable one fused matmul.
    """
    cin, cout = w9.shape[1], w9.shape[2]
    w4 = w9.reshape(3, 3, cin, cout)             # (ky, kx, ci, co)
    wx = jnp.arange(W)[:, None]                  # input width (rows)
    wo = jnp.arange(W)[None, :]                  # output width (cols)
    dx = wx - wo
    band = (jnp.abs(dx) <= 1).astype(jnp.float32)
    kx = jnp.clip(dx + 1, 0, 2)
    mats = []
    for kdy in range(3):
        t = w4[kdy][kx] * band[:, :, None, None]             # (W, W, ci, co)
        mats.append(t.transpose(0, 2, 1, 3).reshape(W * cin, W * cout))
    return jnp.concatenate(mats, axis=0)         # (3*W*Cin, W*Cout)


# ---------------------------------------------------------------------------
# Block forward (NCHW in / NCHW out, like the PyTorch module)
# ---------------------------------------------------------------------------
def block_forward(x_nchw, layers):
    N, C, H, W = x_nchw.shape
    L = len(layers)
    for p in layers:
        assert p["w"].shape[1] == C and p["w"].shape[2] == C, (
            "residual Block requires n_in == n_out, stride == 1")
    NH, WC = N * H, W * C
    assert WC % 128 == 0, "lane-dense layout assumes W*C is a multiple of 128"
    assert NH % 8 == 0, "packed N*H axis must be sublane aligned"

    # Lane-dense activation layout: (N, C, H, W) -> (N*H, W*C)
    x2d = jnp.transpose(x_nchw, (0, 2, 3, 1)).reshape(NH, WC).astype(jnp.float32)

    # Small precomputed constants / repacked parameters (done once, outside
    # the kernel; these are parameters, not activations).
    mask = _row_masks(N, H)                                      # (2, NH, 1)
    pool = _channel_pool_matrix(W, C, N * H * W)                 # (WC, WC)
    wb = jnp.stack([_banded_weight(p["w"], W) for p in layers])  # (L, 3*WC, WC)
    wb = wb.astype(jnp.bfloat16)      # MXU-native conv operands; BN stays f32
    gamma = jnp.stack([jnp.tile(p["gamma"], W) for p in layers])[:, None, :]
    beta = jnp.stack([jnp.tile(p["beta"], W) for p in layers])[:, None, :]
    bias = jnp.stack([jnp.tile(p["b"], W) for p in layers])[:, None, :]

    kernel = functools.partial(_block_kernel, n_layers=L)
    out2d = pl.pallas_call(
        kernel,
        out_shape=jax.ShapeDtypeStruct((NH, WC), jnp.float32),
        grid_spec=pltpu.PrefetchScalarGridSpec(
            num_scalar_prefetch=0,
            grid=(1,),
            in_specs=[
                pl.BlockSpec((NH, WC), lambda i: (0, 0)),
                pl.BlockSpec((2, NH, 1), lambda i: (0, 0, 0)),
                pl.BlockSpec((WC, WC), lambda i: (0, 0)),
                pl.BlockSpec((L, 3 * WC, WC), lambda i: (0, 0, 0)),
                pl.BlockSpec((L, 1, WC), lambda i: (0, 0, 0)),
                pl.BlockSpec((L, 1, WC), lambda i: (0, 0, 0)),
                pl.BlockSpec((L, 1, WC), lambda i: (0, 0, 0)),
            ],
            out_specs=pl.BlockSpec((NH, WC), lambda i: (0, 0)),
        ),
        compiler_params=pltpu.CompilerParams(
            dimension_semantics=("arbitrary",)),
    )(x2d, mask, pool, wb, gamma, beta, bias)

    return jnp.transpose(out2d.reshape(N, H, W, C), (0, 3, 1, 2))


# ---------------------------------------------------------------------------
# Pure-JAX reference (for correctness checking only; f32 throughout)
# ---------------------------------------------------------------------------
def block_forward_ref(x_nchw, layers):
    x = jnp.transpose(x_nchw, (0, 2, 3, 1))
    h = x
    for p in layers:
        mean = jnp.mean(h, axis=(0, 1, 2))
        var = jnp.mean((h - mean) ** 2, axis=(0, 1, 2))
        hn = (h - mean) * jax.lax.rsqrt(var + BN_EPS) * p["gamma"] + p["beta"]
        cin, cout = p["w"].shape[1], p["w"].shape[2]
        w4 = p["w"].reshape(3, 3, cin, cout)                     # HWIO
        conv = jax.lax.conv_general_dilated(
            hn, w4, window_strides=(1, 1), padding=((1, 1), (1, 1)),
            dimension_numbers=("NHWC", "HWIO", "NHWC"))
        h = jnp.maximum(conv + p["b"], 0.0)
    return jnp.transpose(h + x, (0, 3, 1, 2))


def init_block_params(key, n_in, n_out, filter_sz=3, block_sz=3):
    layers = []
    cin = n_in
    for _ in range(block_sz):
        key, kw, kb = jax.random.split(key, 3)
        layers.append({
            "gamma": jnp.ones((cin,), jnp.float32),
            "beta": jnp.zeros((cin,), jnp.float32),
            "w": (jax.random.normal(kw, (filter_sz * filter_sz, cin, n_out),
                                    jnp.float32) * 0.1),
            "b": jax.random.normal(kb, (n_out,), jnp.float32) * 0.05,
        })
        cin = n_out
    return layers


if __name__ == "__main__":
    # n_in == n_out is required by the residual add.
    # N*H = 128 rows and W*C = 128 lanes -> full MXU tiles, lane-dense stores.
    N, C, H, W = 8, 8, 16, 16
    key = jax.random.PRNGKey(0)
    kx, kp = jax.random.split(key)
    x = jax.random.normal(kx, (N, C, H, W), jnp.float32)
    layers = init_block_params(kp, n_in=C, n_out=C, filter_sz=3, block_sz=3)

    out = jax.block_until_ready(block_forward(x, layers))
    ref = jax.block_until_ready(block_forward_ref(x, layers))

    assert out.shape == (N, C, H, W)
    # Tolerance relaxed vs. v2 because conv operands are bf16 (MXU-native);
    # BN statistics are still accumulated in f32.
    np.testing.assert_allclose(np.asarray(out), np.asarray(ref),
                               rtol=5e-2, atol=5e-2)
    print("KERNEL_OK")
</pallas_src>

<mosaic_0001>
module attributes {stable_mosaic.version = 11 : i64} {
  func.func @_block_kernel(%arg0: i32, %arg1: memref<128x128xf32, #tpu.memory_space<vmem>>, %arg2: memref<2x128x1xf32, #tpu.memory_space<vmem>>, %arg3: memref<128x128xf32, #tpu.memory_space<vmem>>, %arg4: memref<3x384x128xbf16, #tpu.memory_space<vmem>>, %arg5: memref<3x1x128xf32, #tpu.memory_space<vmem>>, %arg6: memref<3x1x128xf32, #tpu.memory_space<vmem>>, %arg7: memref<3x1x128xf32, #tpu.memory_space<vmem>>, %arg8: memref<128x128xf32, #tpu.memory_space<vmem>>) attributes {dimension_semantics = [#tpu.dimension_semantics<arbitrary>], iteration_bounds = array<i64: 1>, scalar_prefetch = 0 : i64, scratch_operands = 0 : i64, tpu.core_type = #tpu.core_type<tc>, window_params = [{pipeline_mode = #tpu.pipeline_mode<synchronous>, transform_indices = @transform_0, window_bounds = array<i64: 128, 128>}, {pipeline_mode = #tpu.pipeline_mode<synchronous>, transform_indices = @transform_1, window_bounds = array<i64: 2, 128, 1>}, {pipeline_mode = #tpu.pipeline_mode<synchronous>, transform_indices = @transform_2, window_bounds = array<i64: 128, 128>}, {pipeline_mode = #tpu.pipeline_mode<synchronous>, transform_indices = @transform_3, window_bounds = array<i64: 3, 384, 128>}, {pipeline_mode = #tpu.pipeline_mode<synchronous>, transform_indices = @transform_4, window_bounds = array<i64: 3, 1, 128>}, {pipeline_mode = #tpu.pipeline_mode<synchronous>, transform_indices = @transform_5, window_bounds = array<i64: 3, 1, 128>}, {pipeline_mode = #tpu.pipeline_mode<synchronous>, transform_indices = @transform_6, window_bounds = array<i64: 3, 1, 128>}, {pipeline_mode = #tpu.pipeline_mode<synchronous>, transform_indices = @transform_7, window_bounds = array<i64: 128, 128>}]} {
    %c0 = arith.constant 0 : index
    %c0_0 = arith.constant 0 : index
    %0 = vector.load %arg1[%c0, %c0_0] : memref<128x128xf32, #tpu.memory_space<vmem>>, vector<128x128xf32>
    %c0_1 = arith.constant 0 : index
    %c0_2 = arith.constant 0 : index
    %1 = vector.load %arg3[%c0_1, %c0_2] : memref<128x128xf32, #tpu.memory_space<vmem>>, vector<128x128xf32>
    %c0_3 = arith.constant 0 : index
    %c0_4 = arith.constant 0 : index
    %c0_5 = arith.constant 0 : index
    %2 = vector.load %arg2[%c0_3, %c0_4, %c0_5] : memref<2x128x1xf32, #tpu.memory_space<vmem>>, vector<1x128x1xf32>
    %3 = vector.shape_cast %2 : vector<1x128x1xf32> to vector<128x1xf32>
    %c1 = arith.constant 1 : index
    %c0_6 = arith.constant 0 : index
    %c0_7 = arith.constant 0 : index
    %4 = vector.load %arg2[%c1, %c0_6, %c0_7] : memref<2x128x1xf32, #tpu.memory_space<vmem>>, vector<1x128x1xf32>
    %5 = vector.shape_cast %4 : vector<1x128x1xf32> to vector<128x1xf32>
    %cst = arith.constant dense<0.000000e+00> : vector<128xf32>
    %6 = vector.multi_reduction <add>, %0, %cst [0] : vector<128x128xf32> to vector<128xf32>
    %7 = vector.shape_cast %6 : vector<128xf32> to vector<1x128xf32>
    %cst_8 = arith.constant dense<0.000000e+00> : vector<1x128xf32>
    %8 = tpu.matmul %7, %1, %cst_8 {dimension_numbers = #tpu.dot_dimension_numbers<[1], [0], [0], [1], [0, 0, 1, 1], [], []>} : vector<1x128xf32>, vector<128x128xf32>, vector<1x128xf32> -> vector<1x128xf32>
    %9 = vector.broadcast %8 : vector<1x128xf32> to vector<128x128xf32>
    %10 = arith.subf %0, %9 : vector<128x128xf32>
    %11 = arith.mulf %10, %10 : vector<128x128xf32>
    %cst_9 = arith.constant dense<0.000000e+00> : vector<128xf32>
    %12 = vector.multi_reduction <add>, %11, %cst_9 [0] : vector<128x128xf32> to vector<128xf32>
    %13 = vector.shape_cast %12 : vector<128xf32> to vector<1x128xf32>
    %cst_10 = arith.constant dense<0.000000e+00> : vector<1x128xf32>
    %14 = tpu.matmul %13, %1, %cst_10 {dimension_numbers = #tpu.dot_dimension_numbers<[1], [0], [0], [1], [0, 0, 1, 1], [], []>} : vector<1x128xf32>, vector<128x128xf32>, vector<1x128xf32> -> vector<1x128xf32>
    %c0_11 = arith.constant 0 : index
    %c0_12 = arith.constant 0 : index
    %c0_13 = arith.constant 0 : index
    %15 = vector.load %arg5[%c0_11, %c0_12, %c0_13] : memref<3x1x128xf32, #tpu.memory_space<vmem>>, vector<1x1x128xf32>
    %16 = vector.shape_cast %15 : vector<1x1x128xf32> to vector<1x128xf32>
    %cst_14 = arith.constant 9.99999974E-6 : f32
    %17 = vector.broadcast %cst_14 : f32 to vector<1x128xf32>
    %18 = arith.addf %14, %17 : vector<1x128xf32>
    %19 = math.rsqrt %18 : vector<1x128xf32>
    %20 = arith.mulf %16, %19 : vector<1x128xf32>
    %21 = vector.broadcast %20 : vector<1x128xf32> to vector<128x128xf32>
    %22 = arith.mulf %10, %21 : vector<128x128xf32>
    %c0_15 = arith.constant 0 : index
    %c0_16 = arith.constant 0 : index
    %c0_17 = arith.constant 0 : index
    %23 = vector.load %arg6[%c0_15, %c0_16, %c0_17] : memref<3x1x128xf32, #tpu.memory_space<vmem>>, vector<1x1x128xf32>
    %24 = vector.shape_cast %23 : vector<1x1x128xf32> to vector<1x128xf32>
    %25 = vector.broadcast %24 : vector<1x128xf32> to vector<128x128xf32>
    %26 = arith.addf %22, %25 : vector<128x128xf32>
    %c1_i32 = arith.constant 1 : i32
    %27 = tpu.dynamic_rotate %26 by %c1_i32 dim 0 : vector<128x128xf32>, i32 -> vector<128x128xf32>
    %28 = vector.broadcast %3 : vector<128x1xf32> to vector<128x128xf32>
    %29 = arith.mulf %27, %28 : vector<128x128xf32>
    %c127_i32 = arith.constant 127 : i32
    %30 = tpu.dynamic_rotate %26 by %c127_i32 dim 0 : vector<128x128xf32>, i32 -> vector<128x128xf32>
    %31 = vector.broadcast %5 : vector<128x1xf32> to vector<128x128xf32>
    %32 = arith.mulf %30, %31 : vector<128x128xf32>
    %33 = tpu.concatenate %29, %26, %32 in 1 : vector<128x128xf32>, vector<128x128xf32>, vector<128x128xf32> -> vector<128x384xf32>
    %34 = arith.truncf %33 : vector<128x384xf32> to vector<128x384xbf16>
    %c0_18 = arith.constant 0 : index
    %c0_19 = arith.constant 0 : index
    %c0_20 = arith.constant 0 : index
    %35 = vector.load %arg4[%c0_18, %c0_19, %c0_20] : memref<3x384x128xbf16, #tpu.memory_space<vmem>>, vector<1x384x128xbf16>
    %36 = vector.shape_cast %35 : vector<1x384x128xbf16> to vector<384x128xbf16>
    %cst_21 = arith.constant dense<0.000000e+00> : vector<128x128xf32>
    %37 = tpu.matmul %34, %36, %cst_21 {dimension_numbers = #tpu.dot_dimension_numbers<[1], [0], [0], [1], [0, 0, 1, 1], [], []>} : vector<128x384xbf16>, vector<384x128xbf16>, vector<128x128xf32> -> vector<128x128xf32>
    %c0_22 = arith.constant 0 : index
    %c0_23 = arith.constant 0 : index
    %c0_24 = arith.constant 0 : index
    %38 = vector.load %arg7[%c0_22, %c0_23, %c0_24] : memref<3x1x128xf32, #tpu.memory_space<vmem>>, vector<1x1x128xf32>
    %39 = vector.shape_cast %38 : vector<1x1x128xf32> to vector<1x128xf32>
    %40 = vector.broadcast %39 : vector<1x128xf32> to vector<128x128xf32>
    %41 = arith.addf %37, %40 : vector<128x128xf32>
    %cst_25 = arith.constant 0.000000e+00 : f32
    %42 = vector.broadcast %cst_25 : f32 to vector<128x128xf32>
    %43 = arith.maximumf %41, %42 : vector<128x128xf32>
    %cst_26 = arith.constant dense<0.000000e+00> : vector<128xf32>
    %44 = vector.multi_reduction <add>, %43, %cst_26 [0] : vector<128x128xf32> to vector<128xf32>
    %45 = vector.shape_cast %44 : vector<128xf32> to vector<1x128xf32>
    %cst_27 = arith.constant dense<0.000000e+00> : vector<1x128xf32>
    %46 = tpu.matmul %45, %1, %cst_27 {dimension_numbers = #tpu.dot_dimension_numbers<[1], [0], [0], [1], [0, 0, 1, 1], [], []>} : vector<1x128xf32>, vector<128x128xf32>, vector<1x128xf32> -> vector<1x128xf32>
    %47 = vector.broadcast %46 : vector<1x128xf32> to vector<128x128xf32>
    %48 = arith.subf %43, %47 : vector<128x128xf32>
    %49 = arith.mulf %48, %48 : vector<128x128xf32>
    %cst_28 = arith.constant dense<0.000000e+00> : vector<128xf32>
    %50 = vector.multi_reduction <add>, %49, %cst_28 [0] : vector<128x128xf32> to vector<128xf32>
    %51 = vector.shape_cast %50 : vector<128xf32> to vector<1x128xf32>
    %cst_29 = arith.constant dense<0.000000e+00> : vector<1x128xf32>
    %52 = tpu.matmul %51, %1, %cst_29 {dimension_numbers = #tpu.dot_dimension_numbers<[1], [0], [0], [1], [0, 0, 1, 1], [], []>} : vector<1x128xf32>, vector<128x128xf32>, vector<1x128xf32> -> vector<1x128xf32>
    %c1_30 = arith.constant 1 : index
    %c0_31 = arith.constant 0 : index
    %c0_32 = arith.constant 0 : index
    %53 = vector.load %arg5[%c1_30, %c0_31, %c0_32] : memref<3x1x128xf32, #tpu.memory_space<vmem>>, vector<1x1x128xf32>
    %54 = vector.shape_cast %53 : vector<1x1x128xf32> to vector<1x128xf32>
    %cst_33 = arith.constant 9.99999974E-6 : f32
    %55 = vector.broadcast %cst_33 : f32 to vector<1x128xf32>
    %56 = arith.addf %52, %55 : vector<1x128xf32>
    %57 = math.rsqrt %56 : vector<1x128xf32>
    %58 = arith.mulf %54, %57 : vector<1x128xf32>
    %59 = vector.broadcast %58 : vector<1x128xf32> to vector<128x128xf32>
    %60 = arith.mulf %48, %59 : vector<128x128xf32>
    %c1_34 = arith.constant 1 : index
    %c0_35 = arith.constant 0 : index
    %c0_36 = arith.constant 0 : index
    %61 = vector.load %arg6[%c1_34, %c0_35, %c0_36] : memref<3x1x128xf32, #tpu.memory_space<vmem>>, vector<1x1x128xf32>
    %62 = vector.shape_cast %61 : vector<1x1x128xf32> to vector<1x128xf32>
    %63 = vector.broadcast %62 : vector<1x128xf32> to vector<128x128xf32>
    %64 = arith.addf %60, %63 : vector<128x128xf32>
    %c1_i32_37 = arith.constant 1 : i32
    %65 = tpu.dynamic_rotate %64 by %c1_i32_37 dim 0 : vector<128x128xf32>, i32 -> vector<128x128xf32>
    %66 = vector.broadcast %3 : vector<128x1xf32> to vector<128x128xf32>
    %67 = arith.mulf %65, %66 : vector<128x128xf32>
    %c127_i32_38 = arith.constant 127 : i32
    %68 = tpu.dynamic_rotate %64 by %c127_i32_38 dim 0 : vector<128x128xf32>, i32 -> vector<128x128xf32>
    %69 = vector.broadcast %5 : vector<128x1xf32> to vector<128x128xf32>
    %70 = arith.mulf %68, %69 : vector<128x128xf32>
    %71 = tpu.concatenate %67, %64, %70 in 1 : vector<128x128xf32>, vector<128x128xf32>, vector<128x128xf32> -> vector<128x384xf32>
    %72 = arith.truncf %71 : vector<128x384xf32> to vector<128x384xbf16>
    %c1_39 = arith.constant 1 : index
    %c0_40 = arith.constant 0 : index
    %c0_41 = arith.constant 0 : index
    %73 = vector.load %arg4[%c1_39, %c0_40, %c0_41] : memref<3x384x128xbf16, #tpu.memory_space<vmem>>, vector<1x384x128xbf16>
    %74 = vector.shape_cast %73 : vector<1x384x128xbf16> to vector<384x128xbf16>
    %cst_42 = arith.constant dense<0.000000e+00> : vector<128x128xf32>
    %75 = tpu.matmul %72, %74, %cst_42 {dimension_numbers = #tpu.dot_dimension_numbers<[1], [0], [0], [1], [0, 0, 1, 1], [], []>} : vector<128x384xbf16>, vector<384x128xbf16>, vector<128x128xf32> -> vector<128x128xf32>
    %c1_43 = arith.constant 1 : index
    %c0_44 = arith.constant 0 : index
    %c0_45 = arith.constant 0 : index
    %76 = vector.load %arg7[%c1_43, %c0_44, %c0_45] : memref<3x1x128xf32, #tpu.memory_space<vmem>>, vector<1x1x128xf32>
    %77 = vector.shape_cast %76 : vector<1x1x128xf32> to vector<1x128xf32>
    %78 = vector.broadcast %77 : vector<1x128xf32> to vector<128x128xf32>
    %79 = arith.addf %75, %78 : vector<128x128xf32>
    %cst_46 = arith.constant 0.000000e+00 : f32
    %80 = vector.broadcast %cst_46 : f32 to vector<128x128xf32>
    %81 = arith.maximumf %79, %80 : vector<128x128xf32>
    %cst_47 = arith.constant dense<0.000000e+00> : vector<128xf32>
    %82 = vector.multi_reduction <add>, %81, %cst_47 [0] : vector<128x128xf32> to vector<128xf32>
    %83 = vector.shape_cast %82 : vector<128xf32> to vector<1x128xf32>
    %cst_48 = arith.constant dense<0.000000e+00> : vector<1x128xf32>
    %84 = tpu.matmul %83, %1, %cst_48 {dimension_numbers = #tpu.dot_dimension_numbers<[1], [0], [0], [1], [0, 0, 1, 1], [], []>} : vector<1x128xf32>, vector<128x128xf32>, vector<1x128xf32> -> vector<1x128xf32>
    %85 = vector.broadcast %84 : vector<1x128xf32> to vector<128x128xf32>
    %86 = arith.subf %81, %85 : vector<128x128xf32>
    %87 = arith.mulf %86, %86 : vector<128x128xf32>
    %cst_49 = arith.constant dense<0.000000e+00> : vector<128xf32>
    %88 = vector.multi_reduction <add>, %87, %cst_49 [0] : vector<128x128xf32> to vector<128xf32>
    %89 = vector.shape_cast %88 : vector<128xf32> to vector<1x128xf32>
    %cst_50 = arith.constant dense<0.000000e+00> : vector<1x128xf32>
    %90 = tpu.matmul %89, %1, %cst_50 {dimension_numbers = #tpu.dot_dimension_numbers<[1], [0], [0], [1], [0, 0, 1, 1], [], []>} : vector<1x128xf32>, vector<128x128xf32>, vector<1x128xf32> -> vector<1x128xf32>
    %c2 = arith.constant 2 : index
    %c0_51 = arith.constant 0 : index
    %c0_52 = arith.constant 0 : index
    %91 = vector.load %arg5[%c2, %c0_51, %c0_52] : memref<3x1x128xf32, #tpu.memory_space<vmem>>, vector<1x1x128xf32>
    %92 = vector.shape_cast %91 : vector<1x1x128xf32> to vector<1x128xf32>
    %cst_53 = arith.constant 9.99999974E-6 : f32
    %93 = vector.broadcast %cst_53 : f32 to vector<1x128xf32>
    %94 = arith.addf %90, %93 : vector<1x128xf32>
    %95 = math.rsqrt %94 : vector<1x128xf32>
    %96 = arith.mulf %92, %95 : vector<1x128xf32>
    %97 = vector.broadcast %96 : vector<1x128xf32> to vector<128x128xf32>
    %98 = arith.mulf %86, %97 : vector<128x128xf32>
    %c2_54 = arith.constant 2 : index
    %c0_55 = arith.constant 0 : index
    %c0_56 = arith.constant 0 : index
    %99 = vector.load %arg6[%c2_54, %c0_55, %c0_56] : memref<3x1x128xf32, #tpu.memory_space<vmem>>, vector<1x1x128xf32>
    %100 = vector.shape_cast %99 : vector<1x1x128xf32> to vector<1x128xf32>
    %101 = vector.broadcast %100 : vector<1x128xf32> to vector<128x128xf32>
    %102 = arith.addf %98, %101 : vector<128x128xf32>
    %c1_i32_57 = arith.constant 1 : i32
    %103 = tpu.dynamic_rotate %102 by %c1_i32_57 dim 0 : vector<128x128xf32>, i32 -> vector<128x128xf32>
    %104 = vector.broadcast %3 : vector<128x1xf32> to vector<128x128xf32>
    %105 = arith.mulf %103, %104 : vector<128x128xf32>
    %c127_i32_58 = arith.constant 127 : i32
    %106 = tpu.dynamic_rotate %102 by %c127_i32_58 dim 0 : vector<128x128xf32>, i32 -> vector<128x128xf32>
    %107 = vector.broadcast %5 : vector<128x1xf32> to vector<128x128xf32>
    %108 = arith.mulf %106, %107 : vector<128x128xf32>
    %109 = tpu.concatenate %105, %102, %108 in 1 : vector<128x128xf32>, vector<128x128xf32>, vector<128x128xf32> -> vector<128x384xf32>
    %110 = arith.truncf %109 : vector<128x384xf32> to vector<128x384xbf16>
    %c2_59 = arith.constant 2 : index
    %c0_60 = arith.constant 0 : index
    %c0_61 = arith.constant 0 : index
    %111 = vector.load %arg4[%c2_59, %c0_60, %c0_61] : memref<3x384x128xbf16, #tpu.memory_space<vmem>>, vector<1x384x128xbf16>
    %112 = vector.shape_cast %111 : vector<1x384x128xbf16> to vector<384x128xbf16>
    %cst_62 = arith.constant dense<0.000000e+00> : vector<128x128xf32>
    %113 = tpu.matmul %110, %112, %cst_62 {dimension_numbers = #tpu.dot_dimension_numbers<[1], [0], [0], [1], [0, 0, 1, 1], [], []>} : vector<128x384xbf16>, vector<384x128xbf16>, vector<128x128xf32> -> vector<128x128xf32>
    %c2_63 = arith.constant 2 : index
    %c0_64 = arith.constant 0 : index
    %c0_65 = arith.constant 0 : index
    %114 = vector.load %arg7[%c2_63, %c0_64, %c0_65] : memref<3x1x128xf32, #tpu.memory_space<vmem>>, vector<1x1x128xf32>
    %115 = vector.shape_cast %114 : vector<1x1x128xf32> to vector<1x128xf32>
    %116 = vector.broadcast %115 : vector<1x128xf32> to vector<128x128xf32>
    %117 = arith.addf %113, %116 : vector<128x128xf32>
    %cst_66 = arith.constant 0.000000e+00 : f32
    %118 = vector.broadcast %cst_66 : f32 to vector<128x128xf32>
    %119 = arith.maximumf %117, %118 : vector<128x128xf32>
    %120 = arith.addf %119, %0 : vector<128x128xf32>
    %c0_67 = arith.constant 0 : index
    %c0_68 = arith.constant 0 : index
    %121 = vector.load %arg8[%c0_67, %c0_68] : memref<128x128xf32, #tpu.memory_space<vmem>>, vector<128x128xf32>
    tpu.vector_store %arg8[%c0_67, %c0_68], %120 {strides = array<i32>} : memref<128x128xf32, #tpu.memory_space<vmem>>, vector<128x128xf32>,
    return
  }
  func.func @transform_0(%arg0: i32) -> (i32, i32) {
    %c0_i32 = arith.constant 0 : i32
    %c0_i32_0 = arith.constant 0 : i32
    %c0_i32_1 = arith.constant 0 : i32
    return %c0_i32, %c0_i32_0 : i32, i32
  }
  func.func @transform_1(%arg0: i32) -> (i32, i32, i32) {
    %c0_i32 = arith.constant 0 : i32
    %c0_i32_0 = arith.constant 0 : i32
    %c0_i32_1 = arith.constant 0 : i32
    %c0_i32_2 = arith.constant 0 : i32
    return %c0_i32, %c0_i32_0, %c0_i32_1 : i32, i32, i32
  }
  func.func @transform_2(%arg0: i32) -> (i32, i32) {
    %c0_i32 = arith.constant 0 : i32
    %c0_i32_0 = arith.constant 0 : i32
    %c0_i32_1 = arith.constant 0 : i32
    return %c0_i32, %c0_i32_0 : i32, i32
  }
  func.func @transform_3(%arg0: i32) -> (i32, i32, i32) {
    %c0_i32 = arith.constant 0 : i32
    %c0_i32_0 = arith.constant 0 : i32
    %c0_i32_1 = arith.constant 0 : i32
    %c0_i32_2 = arith.constant 0 : i32
    return %c0_i32, %c0_i32_0, %c0_i32_1 : i32, i32, i32
  }
  func.func @transform_4(%arg0: i32) -> (i32, i32, i32) {
    %c0_i32 = arith.constant 0 : i32
    %c0_i32_0 = arith.constant 0 : i32
    %c0_i32_1 = arith.constant 0 : i32
    %c0_i32_2 = arith.constant 0 : i32
    return %c0_i32, %c0_i32_0, %c0_i32_1 : i32, i32, i32
  }
  func.func @transform_5(%arg0: i32) -> (i32, i32, i32) {
    %c0_i32 = arith.constant 0 : i32
    %c0_i32_0 = arith.constant 0 : i32
    %c0_i32_1 = arith.constant 0 : i32
    %c0_i32_2 = arith.constant 0 : i32
    return %c0_i32, %c0_i32_0, %c0_i32_1 : i32, i32, i32
  }
  func.func @transform_6(%arg0: i32) -> (i32, i32, i32) {
    %c0_i32 = arith.constant 0 : i32
    %c0_i32_0 = arith.constant 0 : i32
    %c0_i32_1 = arith.constant 0 : i32
    %c0_i32_2 = arith.constant 0 : i32
    return %c0_i32, %c0_i32_0, %c0_i32_1 : i32, i32, i32
  }
  func.func @transform_7(%arg0: i32) -> (i32, i32) {
    %c0_i32 = arith.constant 0 : i32
    %c0_i32_0 = arith.constant 0 : i32
    %c0_i32_1 = arith.constant 0 : i32
    return %c0_i32, %c0_i32_0 : i32, i32
  }
}

</mosaic_0001>

<llo_original>
// kernel: tpu_custom_call.1
$region0: #{tpu_custom_call.1}
  #allocation0 [shape = 'u32[]', space=smem, size = 0x4, offset = 0x4, fixed_abs, tag = 'smem constant byte address 0x4 - core index']
  #allocation1 [shape = 'u32[72,128]{1,0:T(1,128)}', space=vmem, size = 0x9000, scoped, tag = 'internal scratch']
  %s0 = inlined_call_operand.vmem [shape: f32[128,128], index: 0, kind: input, shape index: {}]
  %s1 = inlined_call_operand.vmem [shape: f32[2,128,1], index: 1, kind: input, shape index: {}]
  %s2 = inlined_call_operand.vmem [shape: f32[128,128], index: 2, kind: input, shape index: {}]
  %s3 = inlined_call_operand.hbm [shape: bf16[3,384,128], index: 3, kind: input, shape index: {}]
  %s4 = inlined_call_operand.vmem [shape: f32[3,1,128], index: 4, kind: input, shape index: {}]
  %s5 = inlined_call_operand.hbm [shape: f32[3,1,128], index: 5, kind: input, shape index: {}]
  %s6 = inlined_call_operand.vmem [shape: f32[3,1,128], index: 6, kind: input, shape index: {}]
  %s7 = inlined_call_operand.hbm [shape: f32[128,128], index: 7, kind: output, shape index: {}]
  %s8 = sld [smem:[#allocation0]]
  $region46: #{tpu_custom_call.1} parent=0
    _
  %s10 = ssub.s32 1, %s8
  %s11 = scalar_select 0, %s10, %s8
  $region1: #{tpu_custom_call.1} parent=0
    #allocation2 [shape = 'u8[294912]{0}', space=vmem, size = 0x48000, scoped, tag = 'input window, operand 3, single buffered']
    #allocation3 [shape = 's32[1]{0}', space=sflag, size = 0x4, scoped, tag = 'scoped memory for tpu_custom_call.1']
    #allocation4 [shape = 's32[1]{0}', space=sflag, size = 0x4, scoped, tag = 'scoped memory for tpu_custom_call.1']
    #allocation5 [shape = 'u8[1536]{0}', space=vmem, size = 0x800, scoped, tag = 'input window, operand 5, single buffered']
    #allocation6 [shape = 's32[1]{0}', space=sflag, size = 0x4, scoped, tag = 'scoped memory for tpu_custom_call.1']
    #allocation7 [shape = 'u8[65536]{0}', space=vmem, size = 0x10000, scoped, tag = 'output window, operand 0, single buffered']
    %12 = vsyncpa [#allocation3], 0
    %13 = vsyncpa [#allocation6], 0
    %14 = vsyncpa [#allocation4], 0
    // Predicated region
    $region2: #{tpu_custom_call.1} parent=1 // pred_check
      _
    $region3: #{tpu_custom_call.1} parent=1 // pred_check_branch
      %16 = sbr.rel (0) target = $region5
    $region4: #{tpu_custom_call.1} parent=1 // pred_region
      _
    $region5: #{tpu_custom_call.1} parent=1 // pred_fallthru
      _
    // Predicated region
    $region6: #{tpu_custom_call.1} parent=1 // pred_check
      _
    $region7: #{tpu_custom_call.1} parent=1 // pred_check_branch
      %18 = sbr.rel (0) target = $region9
    $region8: #{tpu_custom_call.1} parent=1 // pred_region
      _
    $region9: #{tpu_custom_call.1} parent=1 // pred_fallthru
      _
    // Predicated region
    $region10: #{tpu_custom_call.1} parent=1 // pred_check
      _
    $region11: #{tpu_custom_call.1} parent=1 // pred_check_branch
      %20 = sbr.rel (0) target = $region13
    $region12: #{tpu_custom_call.1} parent=1 // pred_region
      _
    $region13: #{tpu_custom_call.1} parent=1 // pred_fallthru
      _
    // Predicated region
    $region14: #{tpu_custom_call.1} parent=1 // pred_check
      _
    $region15: #{tpu_custom_call.1} parent=1 // pred_check_branch
      %22 = sbr.rel (0) target = $region17
    $region16: #{tpu_custom_call.1} parent=1 // pred_region
      %24 = vsyncadd [#allocation3], 0
      %s25 = sshll.u32 %s3, 4
      %s26 = int_to_ptr.hbm [resolvable:$true] %s25
      %s27 = sshll.u32 [#allocation2], 4
      %s28 = int_to_ptr.vmem [resolvable:$true] %s27
      %33 = dma.hbm_to_vmem [thread:$0]  %s26, 9216, %s28, [#allocation3], 64, 64, 4
    $region17: #{tpu_custom_call.1} parent=1 // pred_fallthru
      _
    // Predicated region
    $region18: #{tpu_custom_call.1} parent=1 // pred_check
      _
    $region19: #{tpu_custom_call.1} parent=1 // pred_check_branch
      %35 = sbr.rel (0) target = $region21
    $region20: #{tpu_custom_call.1} parent=1 // pred_region
      _
    $region21: #{tpu_custom_call.1} parent=1 // pred_fallthru
      _
    // Predicated region
    $region22: #{tpu_custom_call.1} parent=1 // pred_check
      _
    $region23: #{tpu_custom_call.1} parent=1 // pred_check_branch
      %37 = sbr.rel (0) target = $region25
    $region24: #{tpu_custom_call.1} parent=1 // pred_region
      %39 = vsyncadd [#allocation6], 0
      %s40 = sshll.u32 %s5, 4
      %s41 = int_to_ptr.hbm [resolvable:$true] %s40
      %s42 = sshll.u32 [#allocation5], 4
      %s43 = int_to_ptr.vmem [resolvable:$true] %s42
      %48 = dma.hbm_to_vmem [thread:$0]  %s41, 48, %s43, [#allocation6], 16, 16, 1
    $region25: #{tpu_custom_call.1} parent=1 // pred_fallthru
      _
    // Predicated region
    $region26: #{tpu_custom_call.1} parent=1 // pred_check
      _
    $region27: #{tpu_custom_call.1} parent=1 // pred_check_branch
      %50 = sbr.rel (0) target = $region29
    $region28: #{tpu_custom_call.1} parent=1 // pred_region
      _
    $region29: #{tpu_custom_call.1} parent=1 // pred_fallthru
      _
    // Predicated region
    $region30: #{tpu_custom_call.1} parent=1 // pred_check
      _
    $region31: #{tpu_custom_call.1} parent=1 // pred_check_branch
      %52 = sbr.rel (0) target = $region33
    $region32: #{tpu_custom_call.1} parent=1 // pred_region
      %54 = dma.done [#allocation3], 9216
    $region33: #{tpu_custom_call.1} parent=1 // pred_fallthru
      _
    // Predicated region
    $region34: #{tpu_custom_call.1} parent=1 // pred_check
      _
    $region35: #{tpu_custom_call.1} parent=1 // pred_check_branch
      %56 = sbr.rel (0) target = $region37
    $region36: #{tpu_custom_call.1} parent=1 // pred_region
      %58 = dma.done [#allocation6], 48
    $region37: #{tpu_custom_call.1} parent=1 // pred_fallthru
      _
    %v59 = vld [vmem:[%s0] sm:$0xff]
    %v60 = vld [vmem:[%s0 + $0x8] sm:$0xff]
    %v61 = vld [vmem:[%s0 + $0x10] sm:$0xff]
    %v62 = vld [vmem:[%s0 + $0x18] sm:$0xff]
    %v63 = vld [vmem:[%s0 + $0x20] sm:$0xff]
    %v64 = vld [vmem:[%s0 + $0x28] sm:$0xff]
    %v65 = vld [vmem:[%s0 + $0x30] sm:$0xff]
    %v66 = vld [vmem:[%s0 + $0x38] sm:$0xff]
    %v67 = vld [vmem:[%s0 + $0x40] sm:$0xff]
    %v68 = vld [vmem:[%s0 + $0x48] sm:$0xff]
    %v69 = vld [vmem:[%s0 + $0x50] sm:$0xff]
    %v70 = vld [vmem:[%s0 + $0x58] sm:$0xff]
    %v71 = vld [vmem:[%s0 + $0x60] sm:$0xff]
    %v72 = vld [vmem:[%s0 + $0x68] sm:$0xff]
    %v73 = vld [vmem:[%s0 + $0x70] sm:$0xff]
    %v74 = vld [vmem:[%s0 + $0x78] sm:$0xff]
    %v75 = vld [vmem:[%s2] sm:$0xff]
    %v76 = vld [vmem:[%s2 + $0x8] sm:$0xff]
    %v77 = vld [vmem:[%s2 + $0x10] sm:$0xff]
    %v78 = vld [vmem:[%s2 + $0x18] sm:$0xff]
    %v79 = vld [vmem:[%s2 + $0x20] sm:$0xff]
    %v80 = vld [vmem:[%s2 + $0x28] sm:$0xff]
    %v81 = vld [vmem:[%s2 + $0x30] sm:$0xff]
    %v82 = vld [vmem:[%s2 + $0x38] sm:$0xff]
    %v83 = vld [vmem:[%s2 + $0x40] sm:$0xff]
    %v84 = vld [vmem:[%s2 + $0x48] sm:$0xff]
    %v85 = vld [vmem:[%s2 + $0x50] sm:$0xff]
    %v86 = vld [vmem:[%s2 + $0x58] sm:$0xff]
    %v87 = vld [vmem:[%s2 + $0x60] sm:$0xff]
    %v88 = vld [vmem:[%s2 + $0x68] sm:$0xff]
    %v89 = vld [vmem:[%s2 + $0x70] sm:$0xff]
    %v90 = vld [vmem:[%s2 + $0x78] sm:$0xff]
    %v91 = vld [vmem:[%s1] sm:$0xff]
    %v92 = vld [vmem:[%s1 + $0x8] sm:$0xff]
    %v93 = vld [vmem:[%s1 + $0x10] sm:$0xff]
    %v94 = vld [vmem:[%s1 + $0x18] sm:$0xff]
    %v95 = vld [vmem:[%s1 + $0x20] sm:$0xff]
    %v96 = vld [vmem:[%s1 + $0x28] sm:$0xff]
    %v97 = vld [vmem:[%s1 + $0x30] sm:$0xff]
    %v98 = vld [vmem:[%s1 + $0x38] sm:$0xff]
    %v99 = vld [vmem:[%s1 + $0x40] sm:$0xff]
    %v100 = vld [vmem:[%s1 + $0x48] sm:$0xff]
    %v101 = vld [vmem:[%s1 + $0x50] sm:$0xff]
    %v102 = vld [vmem:[%s1 + $0x58] sm:$0xff]
    %v103 = vld [vmem:[%s1 + $0x60] sm:$0xff]
    %v104 = vld [vmem:[%s1 + $0x68] sm:$0xff]
    %v105 = vld [vmem:[%s1 + $0x70] sm:$0xff]
    %v106 = vld [vmem:[%s1 + $0x78] sm:$0xff]
    %s107 = scalar_lea.vmem %s1, 128
    %v108 = vld [vmem:[%s107] sm:$0xff]
    %v109 = vld [vmem:[%s107 + $0x8] sm:$0xff]
    %v110 = vld [vmem:[%s107 + $0x10] sm:$0xff]
    %v111 = vld [vmem:[%s107 + $0x18] sm:$0xff]
    %v112 = vld [vmem:[%s107 + $0x20] sm:$0xff]
    %v113 = vld [vmem:[%s107 + $0x28] sm:$0xff]
    %v114 = vld [vmem:[%s107 + $0x30] sm:$0xff]
    %v115 = vld [vmem:[%s107 + $0x38] sm:$0xff]
    %v116 = vld [vmem:[%s107 + $0x40] sm:$0xff]
    %v117 = vld [vmem:[%s107 + $0x48] sm:$0xff]
    %v118 = vld [vmem:[%s107 + $0x50] sm:$0xff]
    %v119 = vld [vmem:[%s107 + $0x58] sm:$0xff]
    %v120 = vld [vmem:[%s107 + $0x60] sm:$0xff]
    %v121 = vld [vmem:[%s107 + $0x68] sm:$0xff]
    %v122 = vld [vmem:[%s107 + $0x70] sm:$0xff]
    %v123 = vld [vmem:[%s107 + $0x78] sm:$0xff]
    %v124 = vadd.f32 %v59, %v60
    %v125 = vadd.f32 %v124, %v61
    %v126 = vadd.f32 %v125, %v62
    %v127 = vadd.f32 %v126, %v63
    %v128 = vadd.f32 %v127, %v64
    %v129 = vadd.f32 %v128, %v65
    %v130 = vadd.f32 %v129, %v66
    %v131 = vadd.f32 %v130, %v67
    %v132 = vadd.f32 %v131, %v68
    %v133 = vadd.f32 %v132, %v69
    %v134 = vadd.f32 %v133, %v70
    %v135 = vadd.f32 %v134, %v71
    %v136 = vadd.f32 %v135, %v72
    %v137 = vadd.f32 %v136, %v73
    %v138 = vadd.f32 %v137, %v74
    %v139 = vrot.slane %v138, 4
    %v140 = vadd.f32 %v138, %v139
    %v141 = vrot.slane %v140, 2
    %v142 = vadd.f32 %v140, %v141
    %v143 = vrot.slane %v142, 1
    %v144 = vadd.f32 %v142, %v143
    %145 = vmatpush.msra.mxu0 %v90
    %146 = vmatpush.msra.mxu0 %v89
    %147 = vmatpush.msra.mxu0 %v88
    %148 = vmatpush.msra.mxu0 %v87
    %149 = vmatpush.msra.mxu0 %v86
    %150 = vmatpush.msra.mxu0 %v85
    %151 = vmatpush.msra.mxu0 %v84
    %152 = vmatpush.msra.mxu0 %v83
    %153 = vmatpush.msra.mxu0 %v82
    %154 = vmatpush.msra.mxu0 %v81
    %155 = vmatpush.msra.mxu0 %v80
    %156 = vmatpush.msra.mxu0 %v79
    %157 = vmatpush.msra.mxu0 %v78
    %158 = vmatpush.msra.mxu0 %v77
    %159 = vmatpush.msra.mxu0 %v76
    %160 = vmatpush.msra.mxu0 %v75
    %161 = vmatmul.f32.gmra.mxu0 %v144
    %v162 = vpop.f32.mrf.mxu0
    %v163 = vadd.f32 0.0, %v162
    %164 = vdwg.mxu0
    %v165 = vperm.slane %v163, 0
    %v166 = vsub.f32 %v59, %v165
    %v167 = vsub.f32 %v60, %v165
    %v168 = vsub.f32 %v61, %v165
    %v169 = vsub.f32 %v62, %v165
    %v170 = vsub.f32 %v63, %v165
    %v171 = vsub.f32 %v64, %v165
    %v172 = vsub.f32 %v65, %v165
    %v173 = vsub.f32 %v66, %v165
    %v174 = vsub.f32 %v67, %v165
    %v175 = vsub.f32 %v68, %v165
    %v176 = vsub.f32 %v69, %v165
    %v177 = vsub.f32 %v70, %v165
    %v178 = vsub.f32 %v71, %v165
    %v179 = vsub.f32 %v72, %v165
    %v180 = vsub.f32 %v73, %v165
    %v181 = vsub.f32 %v74, %v165
    %v182 = vmul.f32 %v166, %v166
    %v183 = vmul.f32 %v167, %v167
    %v184 = vmul.f32 %v168, %v168
    %v185 = vmul.f32 %v169, %v169
    %v186 = vmul.f32 %v170, %v170
    %v187 = vmul.f32 %v171, %v171
    %v188 = vmul.f32 %v172, %v172
    %v189 = vmul.f32 %v173, %v173
    %v190 = vmul.f32 %v174, %v174
    %v191 = vmul.f32 %v175, %v175
    %v192 = vmul.f32 %v176, %v176
    %v193 = vmul.f32 %v177, %v177
    %v194 = vmul.f32 %v178, %v178
    %v195 = vmul.f32 %v179, %v179
    %v196 = vmul.f32 %v180, %v180
    %v197 = vmul.f32 %v181, %v181
    %v198 = vadd.f32 %v182, %v183
    %v199 = vadd.f32 %v198, %v184
    %v200 = vadd.f32 %v199, %v185
    %v201 = vadd.f32 %v200, %v186
    %v202 = vadd.f32 %v201, %v187
    %v203 = vadd.f32 %v202, %v188
    %v204 = vadd.f32 %v203, %v189
    %v205 = vadd.f32 %v204, %v190
    %v206 = vadd.f32 %v205, %v191
    %v207 = vadd.f32 %v206, %v192
    %v208 = vadd.f32 %v207, %v193
    %v209 = vadd.f32 %v208, %v194
    %v210 = vadd.f32 %v209, %v195
    %v211 = vadd.f32 %v210, %v196
    %v212 = vadd.f32 %v211, %v197
    %v213 = vrot.slane %v212, 4
    %v214 = vadd.f32 %v212, %v213
    %v215 = vrot.slane %v214, 2
    %v216 = vadd.f32 %v214, %v215
    %v217 = vrot.slane %v216, 1
    %v218 = vadd.f32 %v216, %v217
    %v219 = vld [vmem:[%s4] sm:$0x1]
    %220 = vmatpush.msra.mxu0 %v90
    %221 = vmatpush.msra.mxu0 %v89
    %222 = vmatpush.msra.mxu0 %v88
    %223 = vmatpush.msra.mxu0 %v87
    %224 = vmatpush.msra.mxu0 %v86
    %225 = vmatpush.msra.mxu0 %v85
    %226 = vmatpush.msra.mxu0 %v84
    %227 = vmatpush.msra.mxu0 %v83
    %228 = vmatpush.msra.mxu0 %v82
    %229 = vmatpush.msra.mxu0 %v81
    %230 = vmatpush.msra.mxu0 %v80
    %231 = vmatpush.msra.mxu0 %v79
    %232 = vmatpush.msra.mxu0 %v78
    %233 = vmatpush.msra.mxu0 %v77
    %234 = vmatpush.msra.mxu0 %v76
    %235 = vmatpush.msra.mxu0 %v75
    %236 = vmatmul.f32.gmra.mxu0 %v218
    %v237 = vpop.f32.mrf.mxu0
    %v238 = vadd.f32 1e-05, %v237
    %239 = vdwg.mxu0
    %v240 = vrsqrt.pop %v238
    %v241 = vmul.f32 %v240, %v238
    %v242 = vmul.f32 %v241, %v240
    %v243 = vmul.f32 0.5, %v242
    %v244 = vsub.f32 1.5, %v243
    %v245 = vmul.f32 %v240, %v244
    %vm246 = vweird.f32 %v238
    %vm247 = vweird.f32 %v240
    %vm248 = vmor %vm246, %vm247
    %v249 = vsel %vm248, %v240, %v245
    %v250 = vmul.f32 %v219, %v249
    %v252 = vperm.slane %v250, 0
    %v254 = vmul.f32 %v166, %v252
    %v255 = vmul.f32 %v167, %v252
    %v256 = vmul.f32 %v168, %v252
    %v257 = vmul.f32 %v169, %v252
    %v258 = vmul.f32 %v170, %v252
    %v259 = vmul.f32 %v171, %v252
    %v260 = vmul.f32 %v172, %v252
    %v261 = vmul.f32 %v173, %v252
    %v262 = vmul.f32 %v174, %v252
    %v263 = vmul.f32 %v175, %v252
    %v264 = vmul.f32 %v176, %v252
    %v265 = vmul.f32 %v177, %v252
    %v266 = vmul.f32 %v178, %v252
    %v267 = vmul.f32 %v179, %v252
    %v268 = vmul.f32 %v180, %v252
    %v269 = vmul.f32 %v181, %v252
    %v270 = vld [vmem:[#allocation5] sm:$0x1]
    %v272 = vperm.slane %v270, 0
    %v274 = vadd.f32 %v254, %v272
    %v275 = vadd.f32 %v255, %v272
    %v276 = vadd.f32 %v256, %v272
    %v277 = vadd.f32 %v257, %v272
    %v278 = vadd.f32 %v258, %v272
    %v279 = vadd.f32 %v259, %v272
    %v280 = vadd.f32 %v260, %v272
    %v281 = vadd.f32 %v261, %v272
    %v282 = vadd.f32 %v262, %v272
    %v283 = vadd.f32 %v263, %v272
    %v284 = vadd.f32 %v264, %v272
    %v285 = vadd.f32 %v265, %v272
    %v286 = vadd.f32 %v266, %v272
    %v287 = vadd.f32 %v267, %v272
    %v288 = vadd.f32 %v268, %v272
    %v289 = vadd.f32 %v269, %v272
    %v290 = vrot.slane %v274, 7
    %v291 = vrot.slane %v275, 7
    %v292 = vrot.slane %v276, 7
    %v293 = vrot.slane %v277, 7
    %v294 = vrot.slane %v278, 7
    %v295 = vrot.slane %v279, 7
    %v296 = vrot.slane %v280, 7
    %v297 = vrot.slane %v281, 7
    %v298 = vrot.slane %v282, 7
    %v299 = vrot.slane %v283, 7
    %v300 = vrot.slane %v284, 7
    %v301 = vrot.slane %v285, 7
    %v302 = vrot.slane %v286, 7
    %v303 = vrot.slane %v287, 7
    %v304 = vrot.slane %v288, 7
    %v305 = vrot.slane %v289, 7
    %v306 = vlaneseq
    %v307 = vshrl.u32 %v306, 7
    %vm308 = vcmp.lt.s32.totalorder %v307, 1
    %v309 = vsel %vm308, %v304, %v305
    %v310 = vsel %vm308, %v303, %v304
    %v311 = vsel %vm308, %v302, %v303
    %v312 = vsel %vm308, %v301, %v302
    %v313 = vsel %vm308, %v300, %v301
    %v314 = vsel %vm308, %v299, %v300
    %v315 = vsel %vm308, %v298, %v299
    %v316 = vsel %vm308, %v297, %v298
    %v317 = vsel %vm308, %v296, %v297
    %v318 = vsel %vm308, %v295, %v296
    %v319 = vsel %vm308, %v294, %v295
    %v320 = vsel %vm308, %v293, %v294
    %v321 = vsel %vm308, %v292, %v293
    %v322 = vsel %vm308, %v291, %v292
    %v323 = vsel %vm308, %v290, %v291
    %v324 = vsel %vm308, %v305, %v290
    %326 = vset.pattern.permute.xlu0 0
    %327 = vperm.xlu0 %326, %v91
    %v328 = vpop.permute.xlu0 %327
    %331 = vset.pattern.permute.xlu0 0
    %332 = vperm.xlu0 %331, %v92
    %v333 = vpop.permute.xlu0 %332
    %336 = vset.pattern.permute.xlu0 0
    %337 = vperm.xlu0 %336, %v93
    %v338 = vpop.permute.xlu0 %337
    %341 = vset.pattern.permute.xlu0 0
    %342 = vperm.xlu0 %341, %v94
    %v343 = vpop.permute.xlu0 %342
    %346 = vset.pattern.permute.xlu0 0
    %347 = vperm.xlu0 %346, %v95
    %v348 = vpop.permute.xlu0 %347
    %351 = vset.pattern.permute.xlu0 0
    %352 = vperm.xlu0 %351, %v96
    %v353 = vpop.permute.xlu0 %352
    %356 = vset.pattern.permute.xlu0 0
    %357 = vperm.xlu0 %356, %v97
    %v358 = vpop.permute.xlu0 %357
    %361 = vset.pattern.permute.xlu0 0
    %362 = vperm.xlu0 %361, %v98
    %v363 = vpop.permute.xlu0 %362
    %366 = vset.pattern.permute.xlu0 0
    %367 = vperm.xlu0 %366, %v99
    %v368 = vpop.permute.xlu0 %367
    %371 = vset.pattern.permute.xlu0 0
    %372 = vperm.xlu0 %371, %v100
    %v373 = vpop.permute.xlu0 %372
    %376 = vset.pattern.permute.xlu0 0
    %377 = vperm.xlu0 %376, %v101
    %v378 = vpop.permute.xlu0 %377
    %381 = vset.pattern.permute.xlu0 0
    %382 = vperm.xlu0 %381, %v102
    %v383 = vpop.permute.xlu0 %382
    %386 = vset.pattern.permute.xlu0 0
    %387 = vperm.xlu0 %386, %v103
    %v388 = vpop.permute.xlu0 %387
    %391 = vset.pattern.permute.xlu0 0
    %392 = vperm.xlu0 %391, %v104
    %v393 = vpop.permute.xlu0 %392
    %396 = vset.pattern.permute.xlu0 0
    %397 = vperm.xlu0 %396, %v105
    %v398 = vpop.permute.xlu0 %397
    %401 = vset.pattern.permute.xlu0 0
    %402 = vperm.xlu0 %401, %v106
    %v403 = vpop.permute.xlu0 %402
    %v405 = vmul.f32 %v324, %v328
    %v406 = vmul.f32 %v323, %v333
    %v407 = vmul.f32 %v322, %v338
    %v408 = vmul.f32 %v321, %v343
    %v409 = vmul.f32 %v320, %v348
    %v410 = vmul.f32 %v319, %v353
    %v411 = vmul.f32 %v318, %v358
    %v412 = vmul.f32 %v317, %v363
    %v413 = vmul.f32 %v316, %v368
    %v414 = vmul.f32 %v315, %v373
    %v415 = vmul.f32 %v314, %v378
    %v416 = vmul.f32 %v313, %v383
    %v417 = vmul.f32 %v312, %v388
    %v418 = vmul.f32 %v311, %v393
    %v419 = vmul.f32 %v310, %v398
    %v420 = vmul.f32 %v309, %v403
    %v421 = vrot.slane %v274, 1
    %v422 = vrot.slane %v275, 1
    %v423 = vrot.slane %v276, 1
    %v424 = vrot.slane %v277, 1
    %v425 = vrot.slane %v278, 1
    %v426 = vrot.slane %v279, 1
    %v427 = vrot.slane %v280, 1
    %v428 = vrot.slane %v281, 1
    %v429 = vrot.slane %v282, 1
    %v430 = vrot.slane %v283, 1
    %v431 = vrot.slane %v284, 1
    %v432 = vrot.slane %v285, 1
    %v433 = vrot.slane %v286, 1
    %v434 = vrot.slane %v287, 1
    %v435 = vrot.slane %v288, 1
    %v436 = vrot.slane %v289, 1
    %vm437 = vcmp.lt.s32.totalorder %v307, 7
    %v438 = vsel %vm437, %v435, %v436
    %v439 = vsel %vm437, %v434, %v435
    %v440 = vsel %vm437, %v433, %v434
    %v441 = vsel %vm437, %v432, %v433
    %v442 = vsel %vm437, %v431, %v432
    %v443 = vsel %vm437, %v430, %v431
    %v444 = vsel %vm437, %v429, %v430
    %v445 = vsel %vm437, %v428, %v429
    %v446 = vsel %vm437, %v427, %v428
    %v447 = vsel %vm437, %v426, %v427
    %v448 = vsel %vm437, %v425, %v426
    %v449 = vsel %vm437, %v424, %v425
    %v450 = vsel %vm437, %v423, %v424
    %v451 = vsel %vm437, %v422, %v423
    %v452 = vsel %vm437, %v421, %v422
    %v453 = vsel %vm437, %v436, %v421
    %455 = vset.pattern.permute.xlu0 0
    %456 = vperm.xlu0 %455, %v108
    %v457 = vpop.permute.xlu0 %456
    %460 = vset.pattern.permute.xlu0 0
    %461 = vperm.xlu0 %460, %v109
    %v462 = vpop.permute.xlu0 %461
    %465 = vset.pattern.permute.xlu0 0
    %466 = vperm.xlu0 %465, %v110
    %v467 = vpop.permute.xlu0 %466
    %470 = vset.pattern.permute.xlu0 0
    %471 = vperm.xlu0 %470, %v111
    %v472 = vpop.permute.xlu0 %471
    %475 = vset.pattern.permute.xlu0 0
    %476 = vperm.xlu0 %475, %v112
    %v477 = vpop.permute.xlu0 %476
    %480 = vset.pattern.permute.xlu0 0
    %481 = vperm.xlu0 %480, %v113
    %v482 = vpop.permute.xlu0 %481
    %485 = vset.pattern.permute.xlu0 0
    %486 = vperm.xlu0 %485, %v114
    %v487 = vpop.permute.xlu0 %486
    %490 = vset.pattern.permute.xlu0 0
    %491 = vperm.xlu0 %490, %v115
    %v492 = vpop.permute.xlu0 %491
    %495 = vset.pattern.permute.xlu0 0
    %496 = vperm.xlu0 %495, %v116
    %v497 = vpop.permute.xlu0 %496
    %500 = vset.pattern.permute.xlu0 0
    %501 = vperm.xlu0 %500, %v117
    %v502 = vpop.permute.xlu0 %501
    %505 = vset.pattern.permute.xlu0 0
    %506 = vperm.xlu0 %505, %v118
    %v507 = vpop.permute.xlu0 %506
    %510 = vset.pattern.permute.xlu0 0
    %511 = vperm.xlu0 %510, %v119
    %v512 = vpop.permute.xlu0 %511
    %515 = vset.pattern.permute.xlu0 0
    %516 = vperm.xlu0 %515, %v120
    %v517 = vpop.permute.xlu0 %516
    %520 = vset.pattern.permute.xlu0 0
    %521 = vperm.xlu0 %520, %v121
    %v522 = vpop.permute.xlu0 %521
    %525 = vset.pattern.permute.xlu0 0
    %526 = vperm.xlu0 %525, %v122
    %v527 = vpop.permute.xlu0 %526
    %530 = vset.pattern.permute.xlu0 0
    %531 = vperm.xlu0 %530, %v123
    %v532 = vpop.permute.xlu0 %531
    %v534 = vmul.f32 %v452, %v457
    %v535 = vmul.f32 %v451, %v462
    %v536 = vmul.f32 %v450, %v467
    %v537 = vmul.f32 %v449, %v472
    %v538 = vmul.f32 %v448, %v477
    %v539 = vmul.f32 %v447, %v482
    %v540 = vmul.f32 %v446, %v487
    %v541 = vmul.f32 %v445, %v492
    %v542 = vmul.f32 %v444, %v497
    %v543 = vmul.f32 %v443, %v502
    %v544 = vmul.f32 %v442, %v507
    %v545 = vmul.f32 %v441, %v512
    %v546 = vmul.f32 %v440, %v517
    %v547 = vmul.f32 %v439, %v522
    %v548 = vmul.f32 %v438, %v527
    %v549 = vmul.f32 %v453, %v532
    %v550 = vpack.c.bf16 %v406, %v405
    %v551 = vpack.c.bf16 %v275, %v274
    %v552 = vpack.c.bf16 %v535, %v534
    %v553 = vpack.c.bf16 %v408, %v407
    %v554 = vpack.c.bf16 %v277, %v276
    %v555 = vpack.c.bf16 %v537, %v536
    %v556 = vpack.c.bf16 %v410, %v409
    %v557 = vpack.c.bf16 %v279, %v278
    %v558 = vpack.c.bf16 %v539, %v538
    %v559 = vpack.c.bf16 %v412, %v411
    %v560 = vpack.c.bf16 %v281, %v280
    %v561 = vpack.c.bf16 %v541, %v540
    %v562 = vpack.c.bf16 %v414, %v413
    %v563 = vpack.c.bf16 %v283, %v282
    %v564 = vpack.c.bf16 %v543, %v542
    %v565 = vpack.c.bf16 %v416, %v415
    %v566 = vpack.c.bf16 %v285, %v284
    %v567 = vpack.c.bf16 %v545, %v544
    %v568 = vpack.c.bf16 %v418, %v417
    %v569 = vpack.c.bf16 %v287, %v286
    %v570 = vpack.c.bf16 %v547, %v546
    %v571 = vpack.c.bf16 %v420, %v419
    %v572 = vpack.c.bf16 %v289, %v288
    %v573 = vpack.c.bf16 %v549, %v548
    %v574 = vld [vmem:[#allocation2] sm:$0xf]
    %v575 = vld [vmem:[#allocation2 + $0x4] sm:$0xf]
    %v576 = vld [vmem:[#allocation2 + $0x8] sm:$0xf]
    %v577 = vld [vmem:[#allocation2 + $0xc] sm:$0xf]
    %v578 = vld [vmem:[#allocation2 + $0x10] sm:$0xf]
    %v579 = vld [vmem:[#allocation2 + $0x14] sm:$0xf]
    %v580 = vld [vmem:[#allocation2 + $0x18] sm:$0xf]
    %v581 = vld [vmem:[#allocation2 + $0x1c] sm:$0xf]
    %v582 = vld [vmem:[#allocation2 + $0x20] sm:$0xf]
    %v583 = vld [vmem:[#allocation2 + $0x24] sm:$0xf]
    %v584 = vld [vmem:[#allocation2 + $0x28] sm:$0xf]
    %v585 = vld [vmem:[#allocation2 + $0x2c] sm:$0xf]
    %v586 = vld [vmem:[#allocation2 + $0x30] sm:$0xf]
    %v587 = vld [vmem:[#allocation2 + $0x34] sm:$0xf]
    %v588 = vld [vmem:[#allocation2 + $0x38] sm:$0xf]
    %v589 = vld [vmem:[#allocation2 + $0x3c] sm:$0xf]
    %v590 = vld [vmem:[#allocation2 + $0x40] sm:$0xf]
    %v591 = vld [vmem:[#allocation2 + $0x44] sm:$0xf]
    %v592 = vld [vmem:[#allocation2 + $0x48] sm:$0xf]
    %v593 = vld [vmem:[#allocation2 + $0x4c] sm:$0xf]
    %v594 = vld [vmem:[#allocation2 + $0x50] sm:$0xf]
    %v595 = vld [vmem:[#allocation2 + $0x54] sm:$0xf]
    %v596 = vld [vmem:[#allocation2 + $0x58] sm:$0xf]
    %v597 = vld [vmem:[#allocation2 + $0x5c] sm:$0xf]
    %v598 = vld [vmem:[#allocation2 + $0x60] sm:$0xf]
    %v599 = vld [vmem:[#allocation2 + $0x64] sm:$0xf]
    %v600 = vld [vmem:[#allocation2 + $0x68] sm:$0xf]
    %v601 = vld [vmem:[#allocation2 + $0x6c] sm:$0xf]
    %v602 = vld [vmem:[#allocation2 + $0x70] sm:$0xf]
    %v603 = vld [vmem:[#allocation2 + $0x74] sm:$0xf]
    %v604 = vld [vmem:[#allocation2 + $0x78] sm:$0xf]
    %v605 = vld [vmem:[#allocation2 + $0x7c] sm:$0xf]
    %v606 = vld [vmem:[#allocation2 + $0x80] sm:$0xf]
    %v607 = vld [vmem:[#allocation2 + $0x84] sm:$0xf]
    %v608 = vld [vmem:[#allocation2 + $0x88] sm:$0xf]
    %v609 = vld [vmem:[#allocation2 + $0x8c] sm:$0xf]
    %v610 = vld [vmem:[#allocation2 + $0x90] sm:$0xf]
    %v611 = vld [vmem:[#allocation2 + $0x94] sm:$0xf]
    %v612 = vld [vmem:[#allocation2 + $0x98] sm:$0xf]
    %v613 = vld [vmem:[#allocation2 + $0x9c] sm:$0xf]
    %v614 = vld [vmem:[#allocation2 + $0xa0] sm:$0xf]
    %v615 = vld [vmem:[#allocation2 + $0xa4] sm:$0xf]
    %v616 = vld [vmem:[#allocation2 + $0xa8] sm:$0xf]
    %v617 = vld [vmem:[#allocation2 + $0xac] sm:$0xf]
    %v618 = vld [vmem:[#allocation2 + $0xb0] sm:$0xf]
    %v619 = vld [vmem:[#allocation2 + $0xb4] sm:$0xf]
    %v620 = vld [vmem:[#allocation2 + $0xb8] sm:$0xf]
    %v621 = vld [vmem:[#allocation2 + $0xbc] sm:$0xf]
    %v622 = vld [vmem:[%s6] sm:$0x1]
    %v624 = vperm.slane %v622, 0
    %v674 = vunpack.c.l.b16 %v574
    %v675 = vunpack.c.l.b16 %v575
    %v676 = vunpack.c.l.b16 %v576
    %v677 = vunpack.c.l.b16 %v577
    %v678 = vunpack.c.l.b16 %v578
    %v679 = vunpack.c.l.b16 %v579
    %v680 = vunpack.c.l.b16 %v580
    %v681 = vunpack.c.l.b16 %v581
    %v682 = vunpack.c.l.b16 %v582
    %v683 = vunpack.c.l.b16 %v583
    %v684 = vunpack.c.l.b16 %v584
    %v685 = vunpack.c.l.b16 %v585
    %v686 = vunpack.c.l.b16 %v586
    %v687 = vunpack.c.l.b16 %v587
    %v688 = vunpack.c.l.b16 %v588
    %v689 = vunpack.c.l.b16 %v589
    %v690 = vunpack.c.l.b16 %v590
    %v691 = vunpack.c.l.b16 %v591
    %v692 = vunpack.c.l.b16 %v592
    %v693 = vunpack.c.l.b16 %v593
    %v694 = vunpack.c.l.b16 %v594
    %v695 = vunpack.c.l.b16 %v595
    %v696 = vunpack.c.l.b16 %v596
    %v697 = vunpack.c.l.b16 %v597
    %v698 = vunpack.c.l.b16 %v598
    %v699 = vunpack.c.l.b16 %v599
    %v700 = vunpack.c.l.b16 %v600
    %v701 = vunpack.c.l.b16 %v601
    %v702 = vunpack.c.l.b16 %v602
    %v703 = vunpack.c.l.b16 %v603
    %v704 = vunpack.c.l.b16 %v604
    %v705 = vunpack.c.l.b16 %v605
    %v706 = vunpack.c.l.b16 %v606
    %v707 = vunpack.c.l.b16 %v607
    %v708 = vunpack.c.l.b16 %v608
    %v709 = vunpack.c.l.b16 %v609
    %v710 = vunpack.c.l.b16 %v610
    %v711 = vunpack.c.l.b16 %v611
    %v712 = vunpack.c.l.b16 %v612
    %v713 = vunpack.c.l.b16 %v613
    %v714 = vunpack.c.l.b16 %v614
    %v715 = vunpack.c.l.b16 %v615
    %v716 = vunpack.c.l.b16 %v616
    %v717 = vunpack.c.l.b16 %v617
    %v718 = vunpack.c.l.b16 %v618
    %v719 = vunpack.c.l.b16 %v619
    %v720 = vunpack.c.l.b16 %v620
    %v721 = vunpack.c.l.b16 %v621
    %v722 = vpack.c.b16 %v675, %v674
    %v723 = vpack.c.b16 %v677, %v676
    %v724 = vpack.c.b16 %v679, %v678
    %v725 = vpack.c.b16 %v681, %v680
    %v726 = vpack.c.b16 %v683, %v682
    %v727 = vpack.c.b16 %v685, %v684
    %v728 = vpack.c.b16 %v687, %v686
    %v729 = vpack.c.b16 %v689, %v688
    %v730 = vpack.c.b16 %v691, %v690
    %v731 = vpack.c.b16 %v693, %v692
    %v732 = vpack.c.b16 %v695, %v694
    %v733 = vpack.c.b16 %v697, %v696
    %v734 = vpack.c.b16 %v699, %v698
    %v735 = vpack.c.b16 %v701, %v700
    %v736 = vpack.c.b16 %v703, %v702
    %v737 = vpack.c.b16 %v705, %v704
    %v738 = vpack.c.b16 %v707, %v706
    %v739 = vpack.c.b16 %v709, %v708
    %v740 = vpack.c.b16 %v711, %v710
    %v741 = vpack.c.b16 %v713, %v712
    %v742 = vpack.c.b16 %v715, %v714
    %v743 = vpack.c.b16 %v717, %v716
    %v744 = vpack.c.b16 %v719, %v718
    %v745 = vpack.c.b16 %v721, %v720
    %770 = vmatpush.bf16.msra.mxu0 %v729
    %771 = vmatpush.bf16.msra.mxu0 %v728
    %772 = vmatpush.bf16.msra.mxu0 %v727
    %773 = vmatpush.bf16.msra.mxu0 %v726
    %774 = vmatpush.bf16.msra.mxu0 %v725
    %775 = vmatpush.bf16.msra.mxu0 %v724
    %776 = vmatpush.bf16.msra.mxu0 %v723
    %777 = vmatpush.bf16.msra.mxu0 %v722
    %778 = vmatmul.bf16.gmra.mxu0 %v550
    %v779 = vpop.f32.mrf.mxu0
    %v780 = vadd.f32 %v624, %v779
    %v781 = vpop.f32.mrf.mxu0
    %v782 = vadd.f32 %v624, %v781
    %783 = vmatmul.bf16.gmra.mxu0 %v553
    %v784 = vpop.f32.mrf.mxu0
    %v785 = vadd.f32 %v624, %v784
    %v786 = vpop.f32.mrf.mxu0
    %v787 = vadd.f32 %v624, %v786
    %788 = vmatmul.bf16.gmra.mxu0 %v556
    %v789 = vpop.f32.mrf.mxu0
    %v790 = vadd.f32 %v624, %v789
    %v791 = vpop.f32.mrf.mxu0
    %v792 = vadd.f32 %v624, %v791
    %793 = vmatmul.bf16.gmra.mxu0 %v559
    %v794 = vpop.f32.mrf.mxu0
    %v795 = vadd.f32 %v624, %v794
    %v796 = vpop.f32.mrf.mxu0
    %v797 = vadd.f32 %v624, %v796
    %798 = vmatmul.bf16.gmra.mxu0 %v562
    %v799 = vpop.f32.mrf.mxu0
    %v800 = vadd.f32 %v624, %v799
    %v801 = vpop.f32.mrf.mxu0
    %v802 = vadd.f32 %v624, %v801
    %803 = vmatmul.bf16.gmra.mxu0 %v565
    %v804 = vpop.f32.mrf.mxu0
    %v805 = vadd.f32 %v624, %v804
    %v806 = vpop.f32.mrf.mxu0
    %v807 = vadd.f32 %v624, %v806
    %808 = vmatmul.bf16.gmra.mxu0 %v568
    %v809 = vpop.f32.mrf.mxu0
    %v810 = vadd.f32 %v624, %v809
    %v811 = vpop.f32.mrf.mxu0
    %v812 = vadd.f32 %v624, %v811
    %813 = vmatmul.bf16.gmra.mxu0 %v571
    %v814 = vpop.f32.mrf.mxu0
    %v815 = vadd.f32 %v624, %v814
    %v816 = vpop.f32.mrf.mxu0
    %v817 = vadd.f32 %v624, %v816
    %818 = vdwg.mxu0
    %819 = vmatpush.bf16.msra.mxu0 %v737
    %820 = vmatpush.bf16.msra.mxu0 %v736
    %821 = vmatpush.bf16.msra.mxu0 %v735
    %822 = vmatpush.bf16.msra.mxu0 %v734
    %823 = vmatpush.bf16.msra.mxu0 %v733
    %824 = vmatpush.bf16.msra.mxu0 %v732
    %825 = vmatpush.bf16.msra.mxu0 %v731
    %826 = vmatpush.bf16.msra.mxu0 %v730
    %827 = vmatmul.bf16.gmra.mxu0 %v551
    %v828 = vpop.f32.mrf.mxu0
    %v829 = vadd.f32 %v780, %v828
    %v830 = vpop.f32.mrf.mxu0
    %v831 = vadd.f32 %v782, %v830
    %832 = vmatmul.bf16.gmra.mxu0 %v554
    %v833 = vpop.f32.mrf.mxu0
    %v834 = vadd.f32 %v785, %v833
    %v835 = vpop.f32.mrf.mxu0
    %v836 = vadd.f32 %v787, %v835
    %837 = vmatmul.bf16.gmra.mxu0 %v557
    %v838 = vpop.f32.mrf.mxu0
    %v839 = vadd.f32 %v790, %v838
    %v840 = vpop.f32.mrf.mxu0
    %v841 = vadd.f32 %v792, %v840
    %842 = vmatmul.bf16.gmra.mxu0 %v560
    %v843 = vpop.f32.mrf.mxu0
    %v844 = vadd.f32 %v795, %v843
    %v845 = vpop.f32.mrf.mxu0
    %v846 = vadd.f32 %v797, %v845
    %847 = vmatmul.bf16.gmra.mxu0 %v563
    %v848 = vpop.f32.mrf.mxu0
    %v849 = vadd.f32 %v800, %v848
    %v850 = vpop.f32.mrf.mxu0
    %v851 = vadd.f32 %v802, %v850
    %852 = vmatmul.bf16.gmra.mxu0 %v566
    %v853 = vpop.f32.mrf.mxu0
    %v854 = vadd.f32 %v805, %v853
    %v855 = vpop.f32.mrf.mxu0
    %v856 = vadd.f32 %v807, %v855
    %857 = vmatmul.bf16.gmra.mxu0 %v569
    %v858 = vpop.f32.mrf.mxu0
    %v859 = vadd.f32 %v810, %v858
    %v860 = vpop.f32.mrf.mxu0
    %v861 = vadd.f32 %v812, %v860
    %862 = vmatmul.bf16.gmra.mxu0 %v572
    %v863 = vpop.f32.mrf.mxu0
    %v864 = vadd.f32 %v815, %v863
    %v865 = vpop.f32.mrf.mxu0
    %v866 = vadd.f32 %v817, %v865
    %867 = vdwg.mxu0
    %868 = vmatpush.bf16.msra.mxu0 %v745
    %869 = vmatpush.bf16.msra.mxu0 %v744
    %870 = vmatpush.bf16.msra.mxu0 %v743
    %871 = vmatpush.bf16.msra.mxu0 %v742
    %872 = vmatpush.bf16.msra.mxu0 %v741
    %873 = vmatpush.bf16.msra.mxu0 %v740
    %874 = vmatpush.bf16.msra.mxu0 %v739
    %875 = vmatpush.bf16.msra.mxu0 %v738
    %876 = vmatmul.bf16.gmra.mxu0 %v552
    %v877 = vpop.f32.mrf.mxu0
    %v878 = vadd.f32 %v829, %v877
    %v879 = vpop.f32.mrf.mxu0
    %v880 = vadd.f32 %v831, %v879
    %881 = vmatmul.bf16.gmra.mxu0 %v555
    %v882 = vpop.f32.mrf.mxu0
    %v883 = vadd.f32 %v834, %v882
    %v884 = vpop.f32.mrf.mxu0
    %v885 = vadd.f32 %v836, %v884
    %886 = vmatmul.bf16.gmra.mxu0 %v558
    %v887 = vpop.f32.mrf.mxu0
    %v888 = vadd.f32 %v839, %v887
    %v889 = vpop.f32.mrf.mxu0
    %v890 = vadd.f32 %v841, %v889
    %891 = vmatmul.bf16.gmra.mxu0 %v561
    %v892 = vpop.f32.mrf.mxu0
    %v893 = vadd.f32 %v844, %v892
    %v894 = vpop.f32.mrf.mxu0
    %v895 = vadd.f32 %v846, %v894
    %896 = vmatmul.bf16.gmra.mxu0 %v564
    %v897 = vpop.f32.mrf.mxu0
    %v898 = vadd.f32 %v849, %v897
    %v899 = vpop.f32.mrf.mxu0
    %v900 = vadd.f32 %v851, %v899
    %901 = vmatmul.bf16.gmra.mxu0 %v567
    %v902 = vpop.f32.mrf.mxu0
    %v903 = vadd.f32 %v854, %v902
    %v904 = vpop.f32.mrf.mxu0
    %v905 = vadd.f32 %v856, %v904
    %906 = vmatmul.bf16.gmra.mxu0 %v570
    %v907 = vpop.f32.mrf.mxu0
    %v908 = vadd.f32 %v859, %v907
    %v909 = vpop.f32.mrf.mxu0
    %v910 = vadd.f32 %v861, %v909
    %911 = vmatmul.bf16.gmra.mxu0 %v573
    %v912 = vpop.f32.mrf.mxu0
    %v913 = vadd.f32 %v864, %v912
    %v914 = vpop.f32.mrf.mxu0
    %v915 = vadd.f32 %v866, %v914
    %916 = vdwg.mxu0
    %v917 = vmax.f32 %v878, 0.0
    %v918 = vmax.f32 %v880, 0.0
    %v919 = vmax.f32 %v883, 0.0
    %v920 = vmax.f32 %v885, 0.0
    %v921 = vmax.f32 %v888, 0.0
    %v922 = vmax.f32 %v890, 0.0
    %v923 = vmax.f32 %v893, 0.0
    %v924 = vmax.f32 %v895, 0.0
    %v925 = vmax.f32 %v898, 0.0
    %v926 = vmax.f32 %v900, 0.0
    %v927 = vmax.f32 %v903, 0.0
    %v928 = vmax.f32 %v905, 0.0
    %v929 = vmax.f32 %v908, 0.0
    %v930 = vmax.f32 %v910, 0.0
    %v931 = vmax.f32 %v913, 0.0
    %v932 = vmax.f32 %v915, 0.0
    %v933 = vadd.f32 %v917, %v918
    %v934 = vadd.f32 %v933, %v919
    %v935 = vadd.f32 %v934, %v920
    %v936 = vadd.f32 %v935, %v921
    %v937 = vadd.f32 %v936, %v922
    %v938 = vadd.f32 %v937, %v923
    %v939 = vadd.f32 %v938, %v924
    %v940 = vadd.f32 %v939, %v925
    %v941 = vadd.f32 %v940, %v926
    %v942 = vadd.f32 %v941, %v927
    %v943 = vadd.f32 %v942, %v928
    %v944 = vadd.f32 %v943, %v929
    %v945 = vadd.f32 %v944, %v930
    %v946 = vadd.f32 %v945, %v931
    %v947 = vadd.f32 %v946, %v932
    %v948 = vrot.slane %v947, 4
    %v949 = vadd.f32 %v947, %v948
    %v950 = vrot.slane %v949, 2
    %v951 = vadd.f32 %v949, %v950
    %v952 = vrot.slane %v951, 1
    %v953 = vadd.f32 %v951, %v952
    %954 = vmatpush.msra.mxu0 %v90
    %955 = vmatpush.msra.mxu0 %v89
    %956 = vmatpush.msra.mxu0 %v88
    %957 = vmatpush.msra.mxu0 %v87
    %958 = vmatpush.msra.mxu0 %v86
    %959 = vmatpush.msra.mxu0 %v85
    %960 = vmatpush.msra.mxu0 %v84
    %961 = vmatpush.msra.mxu0 %v83
    %962 = vmatpush.msra.mxu0 %v82
    %963 = vmatpush.msra.mxu0 %v81
    %964 = vmatpush.msra.mxu0 %v80
    %965 = vmatpush.msra.mxu0 %v79
    %966 = vmatpush.msra.mxu0 %v78
    %967 = vmatpush.msra.mxu0 %v77
    %968 = vmatpush.msra.mxu0 %v76
    %969 = vmatpush.msra.mxu0 %v75
    %970 = vmatmul.f32.gmra.mxu0 %v953
    %v971 = vpop.f32.mrf.mxu0
    %v972 = vadd.f32 0.0, %v971
    %973 = vdwg.mxu0
    %v974 = vperm.slane %v972, 0
    %v975 = vsub.f32 %v917, %v974
    %v976 = vsub.f32 %v918, %v974
    %v977 = vsub.f32 %v919, %v974
    %v978 = vsub.f32 %v920, %v974
    %v979 = vsub.f32 %v921, %v974
    %v980 = vsub.f32 %v922, %v974
    %v981 = vsub.f32 %v923, %v974
    %v982 = vsub.f32 %v924, %v974
    %v983 = vsub.f32 %v925, %v974
    %v984 = vsub.f32 %v926, %v974
    %v985 = vsub.f32 %v927, %v974
    %v986 = vsub.f32 %v928, %v974
    %v987 = vsub.f32 %v929, %v974
    %v988 = vsub.f32 %v930, %v974
    %v989 = vsub.f32 %v931, %v974
    %v990 = vsub.f32 %v932, %v974
    %v991 = vmul.f32 %v975, %v975
    %v992 = vmul.f32 %v976, %v976
    %v993 = vmul.f32 %v977, %v977
    %v994 = vmul.f32 %v978, %v978
    %v995 = vmul.f32 %v979, %v979
    %v996 = vmul.f32 %v980, %v980
    %v997 = vmul.f32 %v981, %v981
    %v998 = vmul.f32 %v982, %v982
    %v999 = vmul.f32 %v983, %v983
    %v1000 = vmul.f32 %v984, %v984
    %v1001 = vmul.f32 %v985, %v985
    %v1002 = vmul.f32 %v986, %v986
    %v1003 = vmul.f32 %v987, %v987
    %v1004 = vmul.f32 %v988, %v988
    %v1005 = vmul.f32 %v989, %v989
    %v1006 = vmul.f32 %v990, %v990
    %v1007 = vadd.f32 %v991, %v992
    %v1008 = vadd.f32 %v1007, %v993
    %v1009 = vadd.f32 %v1008, %v994
    %v1010 = vadd.f32 %v1009, %v995
    %v1011 = vadd.f32 %v1010, %v996
    %v1012 = vadd.f32 %v1011, %v997
    %v1013 = vadd.f32 %v1012, %v998
    %v1014 = vadd.f32 %v1013, %v999
    %v1015 = vadd.f32 %v1014, %v1000
    %v1016 = vadd.f32 %v1015, %v1001
    %v1017 = vadd.f32 %v1016, %v1002
    %v1018 = vadd.f32 %v1017, %v1003
    %v1019 = vadd.f32 %v1018, %v1004
    %v1020 = vadd.f32 %v1019, %v1005
    %v1021 = vadd.f32 %v1020, %v1006
    %v1022 = vrot.slane %v1021, 4
    %v1023 = vadd.f32 %v1021, %v1022
    %v1024 = vrot.slane %v1023, 2
    %v1025 = vadd.f32 %v1023, %v1024
    %v1026 = vrot.slane %v1025, 1
    %v1027 = vadd.f32 %v1025, %v1026
    %s1028 = scalar_lea.vmem %s4, 1
    %v1029 = vld [vmem:[%s1028] sm:$0x1]
    %1030 = vmatpush.msra.mxu0 %v90
    %1031 = vmatpush.msra.mxu0 %v89
    %1032 = vmatpush.msra.mxu0 %v88
    %1033 = vmatpush.msra.mxu0 %v87
    %1034 = vmatpush.msra.mxu0 %v86
    %1035 = vmatpush.msra.mxu0 %v85
    %1036 = vmatpush.msra.mxu0 %v84
    %1037 = vmatpush.msra.mxu0 %v83
    %1038 = vmatpush.msra.mxu0 %v82
    %1039 = vmatpush.msra.mxu0 %v81
    %1040 = vmatpush.msra.mxu0 %v80
    %1041 = vmatpush.msra.mxu0 %v79
    %1042 = vmatpush.msra.mxu0 %v78
    %1043 = vmatpush.msra.mxu0 %v77
    %1044 = vmatpush.msra.mxu0 %v76
    %1045 = vmatpush.msra.mxu0 %v75
    %1046 = vmatmul.f32.gmra.mxu0 %v1027
    %v1047 = vpop.f32.mrf.mxu0
    %v1048 = vadd.f32 1e-05, %v1047
    %1049 = vdwg.mxu0
    %v1050 = vrsqrt.pop %v1048
    %v1051 = vmul.f32 %v1050, %v1048
    %v1052 = vmul.f32 %v1051, %v1050
    %v1053 = vmul.f32 0.5, %v1052
    %v1054 = vsub.f32 1.5, %v1053
    %v1055 = vmul.f32 %v1050, %v1054
    %vm1056 = vweird.f32 %v1048
    %vm1057 = vweird.f32 %v1050
    %vm1058 = vmor %vm1056, %vm1057
    %v1059 = vsel %vm1058, %v1050, %v1055
    %v1060 = vmul.f32 %v1029, %v1059
    %v1062 = vperm.slane %v1060, 0
    %v1064 = vmul.f32 %v975, %v1062
    %v1065 = vmul.f32 %v976, %v1062
    %v1066 = vmul.f32 %v977, %v1062
    %v1067 = vmul.f32 %v978, %v1062
    %v1068 = vmul.f32 %v979, %v1062
    %v1069 = vmul.f32 %v980, %v1062
    %v1070 = vmul.f32 %v981, %v1062
    %v1071 = vmul.f32 %v982, %v1062
    %v1072 = vmul.f32 %v983, %v1062
    %v1073 = vmul.f32 %v984, %v1062
    %v1074 = vmul.f32 %v985, %v1062
    %v1075 = vmul.f32 %v986, %v1062
    %v1076 = vmul.f32 %v987, %v1062
    %v1077 = vmul.f32 %v988, %v1062
    %v1078 = vmul.f32 %v989, %v1062
    %v1079 = vmul.f32 %v990, %v1062
    %s1080 = scalar_lea.vmem [#allocation5], 1
    %v1081 = vld [vmem:[%s1080] sm:$0x1]
    %v1083 = vperm.slane %v1081, 0
    %v1085 = vadd.f32 %v1064, %v1083
    %v1086 = vadd.f32 %v1065, %v1083
    %v1087 = vadd.f32 %v1066, %v1083
    %v1088 = vadd.f32 %v1067, %v1083
    %v1089 = vadd.f32 %v1068, %v1083
    %v1090 = vadd.f32 %v1069, %v1083
    %v1091 = vadd.f32 %v1070, %v1083
    %v1092 = vadd.f32 %v1071, %v1083
    %v1093 = vadd.f32 %v1072, %v1083
    %v1094 = vadd.f32 %v1073, %v1083
    %v1095 = vadd.f32 %v1074, %v1083
    %v1096 = vadd.f32 %v1075, %v1083
    %v1097 = vadd.f32 %v1076, %v1083
    %v1098 = vadd.f32 %v1077, %v1083
    %v1099 = vadd.f32 %v1078, %v1083
    %v1100 = vadd.f32 %v1079, %v1083
    %v1101 = vrot.slane %v1085, 7
    %v1102 = vrot.slane %v1086, 7
    %v1103 = vrot.slane %v1087, 7
    %v1104 = vrot.slane %v1088, 7
    %v1105 = vrot.slane %v1089, 7
    %v1106 = vrot.slane %v1090, 7
    %v1107 = vrot.slane %v1091, 7
    %v1108 = vrot.slane %v1092, 7
    %v1109 = vrot.slane %v1093, 7
    %v1110 = vrot.slane %v1094, 7
    %v1111 = vrot.slane %v1095, 7
    %v1112 = vrot.slane %v1096, 7
    %v1113 = vrot.slane %v1097, 7
    %v1114 = vrot.slane %v1098, 7
    %v1115 = vrot.slane %v1099, 7
    %v1116 = vrot.slane %v1100, 7
    %v1117 = vsel %vm308, %v1115, %v1116
    %v1118 = vsel %vm308, %v1114, %v1115
    %v1119 = vsel %vm308, %v1113, %v1114
    %v1120 = vsel %vm308, %v1112, %v1113
    %v1121 = vsel %vm308, %v1111, %v1112
    %v1122 = vsel %vm308, %v1110, %v1111
    %v1123 = vsel %vm308, %v1109, %v1110
    %v1124 = vsel %vm308, %v1108, %v1109
    %v1125 = vsel %vm308, %v1107, %v1108
    %v1126 = vsel %vm308, %v1106, %v1107
    %v1127 = vsel %vm308, %v1105, %v1106
    %v1128 = vsel %vm308, %v1104, %v1105
    %v1129 = vsel %vm308, %v1103, %v1104
    %v1130 = vsel %vm308, %v1102, %v1103
    %v1131 = vsel %vm308, %v1101, %v1102
    %v1132 = vsel %vm308, %v1116, %v1101
    %v1133 = vmul.f32 %v1132, %v328
    %v1134 = vmul.f32 %v1131, %v333
    %v1135 = vmul.f32 %v1130, %v338
    %v1136 = vmul.f32 %v1129, %v343
    %v1137 = vmul.f32 %v1128, %v348
    %v1138 = vmul.f32 %v1127, %v353
    %v1139 = vmul.f32 %v1126, %v358
    %v1140 = vmul.f32 %v1125, %v363
    %v1141 = vmul.f32 %v1124, %v368
    %v1142 = vmul.f32 %v1123, %v373
    %v1143 = vmul.f32 %v1122, %v378
    %v1144 = vmul.f32 %v1121, %v383
    %v1145 = vmul.f32 %v1120, %v388
    %v1146 = vmul.f32 %v1119, %v393
    %v1147 = vmul.f32 %v1118, %v398
    %v1148 = vmul.f32 %v1117, %v403
    %v1149 = vrot.slane %v1085, 1
    %v1150 = vrot.slane %v1086, 1
    %v1151 = vrot.slane %v1087, 1
    %v1152 = vrot.slane %v1088, 1
    %v1153 = vrot.slane %v1089, 1
    %v1154 = vrot.slane %v1090, 1
    %v1155 = vrot.slane %v1091, 1
    %v1156 = vrot.slane %v1092, 1
    %v1157 = vrot.slane %v1093, 1
    %v1158 = vrot.slane %v1094, 1
    %v1159 = vrot.slane %v1095, 1
    %v1160 = vrot.slane %v1096, 1
    %v1161 = vrot.slane %v1097, 1
    %v1162 = vrot.slane %v1098, 1
    %v1163 = vrot.slane %v1099, 1
    %v1164 = vrot.slane %v1100, 1
    %v1165 = vsel %vm437, %v1163, %v1164
    %v1166 = vsel %vm437, %v1162, %v1163
    %v1167 = vsel %vm437, %v1161, %v1162
    %v1168 = vsel %vm437, %v1160, %v1161
    %v1169 = vsel %vm437, %v1159, %v1160
    %v1170 = vsel %vm437, %v1158, %v1159
    %v1171 = vsel %vm437, %v1157, %v1158
    %v1172 = vsel %vm437, %v1156, %v1157
    %v1173 = vsel %vm437, %v1155, %v1156
    %v1174 = vsel %vm437, %v1154, %v1155
    %v1175 = vsel %vm437, %v1153, %v1154
    %v1176 = vsel %vm437, %v1152, %v1153
    %v1177 = vsel %vm437, %v1151, %v1152
    %v1178 = vsel %vm437, %v1150, %v1151
    %v1179 = vsel %vm437, %v1149, %v1150
    %v1180 = vsel %vm437, %v1164, %v1149
    %v1181 = vmul.f32 %v1179, %v457
    %v1182 = vmul.f32 %v1178, %v462
    %v1183 = vmul.f32 %v1177, %v467
    %v1184 = vmul.f32 %v1176, %v472
    %v1185 = vmul.f32 %v1175, %v477
    %v1186 = vmul.f32 %v1174, %v482
    %v1187 = vmul.f32 %v1173, %v487
    %v1188 = vmul.f32 %v1172, %v492
    %v1189 = vmul.f32 %v1171, %v497
    %v1190 = vmul.f32 %v1170, %v502
    %v1191 = vmul.f32 %v1169, %v507
    %v1192 = vmul.f32 %v1168, %v512
    %v1193 = vmul.f32 %v1167, %v517
    %v1194 = vmul.f32 %v1166, %v522
    %v1195 = vmul.f32 %v1165, %v527
    %v1196 = vmul.f32 %v1180, %v532
    %v1197 = vpack.c.bf16 %v1134, %v1133
    %v1198 = vpack.c.bf16 %v1086, %v1085
    %v1199 = vpack.c.bf16 %v1182, %v1181
    %v1200 = vpack.c.bf16 %v1136, %v1135
    %v1201 = vpack.c.bf16 %v1088, %v1087
    %v1202 = vpack.c.bf16 %v1184, %v1183
    %v1203 = vpack.c.bf16 %v1138, %v1137
    %v1204 = vpack.c.bf16 %v1090, %v1089
    %v1205 = vpack.c.bf16 %v1186, %v1185
    %v1206 = vpack.c.bf16 %v1140, %v1139
    %v1207 = vpack.c.bf16 %v1092, %v1091
    %v1208 = vpack.c.bf16 %v1188, %v1187
    %v1209 = vpack.c.bf16 %v1142, %v1141
    %v1210 = vpack.c.bf16 %v1094, %v1093
    %v1211 = vpack.c.bf16 %v1190, %v1189
    %v1212 = vpack.c.bf16 %v1144, %v1143
    %v1213 = vpack.c.bf16 %v1096, %v1095
    %v1214 = vpack.c.bf16 %v1192, %v1191
    %v1215 = vpack.c.bf16 %v1146, %v1145
    %v1216 = vpack.c.bf16 %v1098, %v1097
    %v1217 = vpack.c.bf16 %v1194, %v1193
    %v1218 = vpack.c.bf16 %v1148, %v1147
    %v1219 = vpack.c.bf16 %v1100, %v1099
    %v1220 = vpack.c.bf16 %v1196, %v1195
    %s1221 = scalar_lea.vmem [#allocation2], 192
    %v1222 = vld [vmem:[%s1221] sm:$0xf]
    %v1223 = vld [vmem:[%s1221 + $0x4] sm:$0xf]
    %v1224 = vld [vmem:[%s1221 + $0x8] sm:$0xf]
    %v1225 = vld [vmem:[%s1221 + $0xc] sm:$0xf]
    %v1226 = vld [vmem:[%s1221 + $0x10] sm:$0xf]
    %v1227 = vld [vmem:[%s1221 + $0x14] sm:$0xf]
    %v1228 = vld [vmem:[%s1221 + $0x18] sm:$0xf]
    %v1229 = vld [vmem:[%s1221 + $0x1c] sm:$0xf]
    %v1230 = vld [vmem:[%s1221 + $0x20] sm:$0xf]
    %v1231 = vld [vmem:[%s1221 + $0x24] sm:$0xf]
    %v1232 = vld [vmem:[%s1221 + $0x28] sm:$0xf]
    %v1233 = vld [vmem:[%s1221 + $0x2c] sm:$0xf]
    %v1234 = vld [vmem:[%s1221 + $0x30] sm:$0xf]
    %v1235 = vld [vmem:[%s1221 + $0x34] sm:$0xf]
    %v1236 = vld [vmem:[%s1221 + $0x38] sm:$0xf]
    %v1237 = vld [vmem:[%s1221 + $0x3c] sm:$0xf]
    %v1238 = vld [vmem:[%s1221 + $0x40] sm:$0xf]
    %v1239 = vld [vmem:[%s1221 + $0x44] sm:$0xf]
    %v1240 = vld [vmem:[%s1221 + $0x48] sm:$0xf]
    %v1241 = vld [vmem:[%s1221 + $0x4c] sm:$0xf]
    %v1242 = vld [vmem:[%s1221 + $0x50] sm:$0xf]
    %v1243 = vld [vmem:[%s1221 + $0x54] sm:$0xf]
    %v1244 = vld [vmem:[%s1221 + $0x58] sm:$0xf]
    %v1245 = vld [vmem:[%s1221 + $0x5c] sm:$0xf]
    %v1246 = vld [vmem:[%s1221 + $0x60] sm:$0xf]
    %v1247 = vld [vmem:[%s1221 + $0x64] sm:$0xf]
    %v1248 = vld [vmem:[%s1221 + $0x68] sm:$0xf]
    %v1249 = vld [vmem:[%s1221 + $0x6c] sm:$0xf]
    %v1250 = vld [vmem:[%s1221 + $0x70] sm:$0xf]
    %v1251 = vld [vmem:[%s1221 + $0x74] sm:$0xf]
    %v1252 = vld [vmem:[%s1221 + $0x78] sm:$0xf]
    %v1253 = vld [vmem:[%s1221 + $0x7c] sm:$0xf]
    %v1254 = vld [vmem:[%s1221 + $0x80] sm:$0xf]
    %v1255 = vld [vmem:[%s1221 + $0x84] sm:$0xf]
    %v1256 = vld [vmem:[%s1221 + $0x88] sm:$0xf]
    %v1257 = vld [vmem:[%s1221 + $0x8c] sm:$0xf]
    %v1258 = vld [vmem:[%s1221 + $0x90] sm:$0xf]
    %v1259 = vld [vmem:[%s1221 + $0x94] sm:$0xf]
    %v1260 = vld [vmem:[%s1221 + $0x98] sm:$0xf]
    %v1261 = vld [vmem:[%s1221 + $0x9c] sm:$0xf]
    %v1262 = vld [vmem:[%s1221 + $0xa0] sm:$0xf]
    %v1263 = vld [vmem:[%s1221 + $0xa4] sm:$0xf]
    %v1264 = vld [vmem:[%s1221 + $0xa8] sm:$0xf]
    %v1265 = vld [vmem:[%s1221 + $0xac] sm:$0xf]
    %v1266 = vld [vmem:[%s1221 + $0xb0] sm:$0xf]
    %v1267 = vld [vmem:[%s1221 + $0xb4] sm:$0xf]
    %v1268 = vld [vmem:[%s1221 + $0xb8] sm:$0xf]
    %v1269 = vld [vmem:[%s1221 + $0xbc] sm:$0xf]
    %s1270 = scalar_lea.vmem %s6, 1
    %v1271 = vld [vmem:[%s1270] sm:$0x1]
    %v1273 = vperm.slane %v1271, 0
    %v1323 = vunpack.c.l.b16 %v1222
    %v1324 = vunpack.c.l.b16 %v1223
    %v1325 = vunpack.c.l.b16 %v1224
    %v1326 = vunpack.c.l.b16 %v1225
    %v1327 = vunpack.c.l.b16 %v1226
    %v1328 = vunpack.c.l.b16 %v1227
    %v1329 = vunpack.c.l.b16 %v1228
    %v1330 = vunpack.c.l.b16 %v1229
    %v1331 = vunpack.c.l.b16 %v1230
    %v1332 = vunpack.c.l.b16 %v1231
    %v1333 = vunpack.c.l.b16 %v1232
    %v1334 = vunpack.c.l.b16 %v1233
    %v1335 = vunpack.c.l.b16 %v1234
    %v1336 = vunpack.c.l.b16 %v1235
    %v1337 = vunpack.c.l.b16 %v1236
    %v1338 = vunpack.c.l.b16 %v1237
    %v1339 = vunpack.c.l.b16 %v1238
    %v1340 = vunpack.c.l.b16 %v1239
    %v1341 = vunpack.c.l.b16 %v1240
    %v1342 = vunpack.c.l.b16 %v1241
    %v1343 = vunpack.c.l.b16 %v1242
    %v1344 = vunpack.c.l.b16 %v1243
    %v1345 = vunpack.c.l.b16 %v1244
    %v1346 = vunpack.c.l.b16 %v1245
    %v1347 = vunpack.c.l.b16 %v1246
    %v1348 = vunpack.c.l.b16 %v1247
    %v1349 = vunpack.c.l.b16 %v1248
    %v1350 = vunpack.c.l.b16 %v1249
    %v1351 = vunpack.c.l.b16 %v1250
    %v1352 = vunpack.c.l.b16 %v1251
    %v1353 = vunpack.c.l.b16 %v1252
    %v1354 = vunpack.c.l.b16 %v1253
    %v1355 = vunpack.c.l.b16 %v1254
    %v1356 = vunpack.c.l.b16 %v1255
    %v1357 = vunpack.c.l.b16 %v1256
    %v1358 = vunpack.c.l.b16 %v1257
    %v1359 = vunpack.c.l.b16 %v1258
    %v1360 = vunpack.c.l.b16 %v1259
    %v1361 = vunpack.c.l.b16 %v1260
    %v1362 = vunpack.c.l.b16 %v1261
    %v1363 = vunpack.c.l.b16 %v1262
    %v1364 = vunpack.c.l.b16 %v1263
    %v1365 = vunpack.c.l.b16 %v1264
    %v1366 = vunpack.c.l.b16 %v1265
    %v1367 = vunpack.c.l.b16 %v1266
    %v1368 = vunpack.c.l.b16 %v1267
    %v1369 = vunpack.c.l.b16 %v1268
    %v1370 = vunpack.c.l.b16 %v1269
    %v1371 = vpack.c.b16 %v1324, %v1323
    %v1372 = vpack.c.b16 %v1326, %v1325
    %v1373 = vpack.c.b16 %v1328, %v1327
    %v1374 = vpack.c.b16 %v1330, %v1329
    %v1375 = vpack.c.b16 %v1332, %v1331
    %v1376 = vpack.c.b16 %v1334, %v1333
    %v1377 = vpack.c.b16 %v1336, %v1335
    %v1378 = vpack.c.b16 %v1338, %v1337
    %v1379 = vpack.c.b16 %v1340, %v1339
    %v1380 = vpack.c.b16 %v1342, %v1341
    %v1381 = vpack.c.b16 %v1344, %v1343
    %v1382 = vpack.c.b16 %v1346, %v1345
    %v1383 = vpack.c.b16 %v1348, %v1347
    %v1384 = vpack.c.b16 %v1350, %v1349
    %v1385 = vpack.c.b16 %v1352, %v1351
    %v1386 = vpack.c.b16 %v1354, %v1353
    %v1387 = vpack.c.b16 %v1356, %v1355
    %v1388 = vpack.c.b16 %v1358, %v1357
    %v1389 = vpack.c.b16 %v1360, %v1359
    %v1390 = vpack.c.b16 %v1362, %v1361
    %v1391 = vpack.c.b16 %v1364, %v1363
    %v1392 = vpack.c.b16 %v1366, %v1365
    %v1393 = vpack.c.b16 %v1368, %v1367
    %v1394 = vpack.c.b16 %v1370, %v1369
    %1419 = vmatpush.bf16.msra.mxu0 %v1378
    %1420 = vmatpush.bf16.msra.mxu0 %v1377
    %1421 = vmatpush.bf16.msra.mxu0 %v1376
    %1422 = vmatpush.bf16.msra.mxu0 %v1375
    %1423 = vmatpush.bf16.msra.mxu0 %v1374
    %1424 = vmatpush.bf16.msra.mxu0 %v1373
    %1425 = vmatpush.bf16.msra.mxu0 %v1372
    %1426 = vmatpush.bf16.msra.mxu0 %v1371
    %1427 = vmatmul.bf16.gmra.mxu0 %v1197
    %v1428 = vpop.f32.mrf.mxu0
    %v1429 = vadd.f32 %v1273, %v1428
    %v1430 = vpop.f32.mrf.mxu0
    %v1431 = vadd.f32 %v1273, %v1430
    %1432 = vmatmul.bf16.gmra.mxu0 %v1200
    %v1433 = vpop.f32.mrf.mxu0
    %v1434 = vadd.f32 %v1273, %v1433
    %v1435 = vpop.f32.mrf.mxu0
    %v1436 = vadd.f32 %v1273, %v1435
    %1437 = vmatmul.bf16.gmra.mxu0 %v1203
    %v1438 = vpop.f32.mrf.mxu0
    %v1439 = vadd.f32 %v1273, %v1438
    %v1440 = vpop.f32.mrf.mxu0
    %v1441 = vadd.f32 %v1273, %v1440
    %1442 = vmatmul.bf16.gmra.mxu0 %v1206
    %v1443 = vpop.f32.mrf.mxu0
    %v1444 = vadd.f32 %v1273, %v1443
    %v1445 = vpop.f32.mrf.mxu0
    %v1446 = vadd.f32 %v1273, %v1445
    %1447 = vmatmul.bf16.gmra.mxu0 %v1209
    %v1448 = vpop.f32.mrf.mxu0
    %v1449 = vadd.f32 %v1273, %v1448
    %v1450 = vpop.f32.mrf.mxu0
    %v1451 = vadd.f32 %v1273, %v1450
    %1452 = vmatmul.bf16.gmra.mxu0 %v1212
    %v1453 = vpop.f32.mrf.mxu0
    %v1454 = vadd.f32 %v1273, %v1453
    %v1455 = vpop.f32.mrf.mxu0
    %v1456 = vadd.f32 %v1273, %v1455
    %1457 = vmatmul.bf16.gmra.mxu0 %v1215
    %v1458 = vpop.f32.mrf.mxu0
    %v1459 = vadd.f32 %v1273, %v1458
    %v1460 = vpop.f32.mrf.mxu0
    %v1461 = vadd.f32 %v1273, %v1460
    %1462 = vmatmul.bf16.gmra.mxu0 %v1218
    %v1463 = vpop.f32.mrf.mxu0
    %v1464 = vadd.f32 %v1273, %v1463
    %v1465 = vpop.f32.mrf.mxu0
    %v1466 = vadd.f32 %v1273, %v1465
    %1467 = vdwg.mxu0
    %1468 = vmatpush.bf16.msra.mxu0 %v1386
    %1469 = vmatpush.bf16.msra.mxu0 %v1385
    %1470 = vmatpush.bf16.msra.mxu0 %v1384
    %1471 = vmatpush.bf16.msra.mxu0 %v1383
    %1472 = vmatpush.bf16.msra.mxu0 %v1382
    %1473 = vmatpush.bf16.msra.mxu0 %v1381
    %1474 = vmatpush.bf16.msra.mxu0 %v1380
    %1475 = vmatpush.bf16.msra.mxu0 %v1379
    %1476 = vmatmul.bf16.gmra.mxu0 %v1198
    %v1477 = vpop.f32.mrf.mxu0
    %v1478 = vadd.f32 %v1429, %v1477
    %v1479 = vpop.f32.mrf.mxu0
    %v1480 = vadd.f32 %v1431, %v1479
    %1481 = vmatmul.bf16.gmra.mxu0 %v1201
    %v1482 = vpop.f32.mrf.mxu0
    %v1483 = vadd.f32 %v1434, %v1482
    %v1484 = vpop.f32.mrf.mxu0
    %v1485 = vadd.f32 %v1436, %v1484
    %1486 = vmatmul.bf16.gmra.mxu0 %v1204
    %v1487 = vpop.f32.mrf.mxu0
    %v1488 = vadd.f32 %v1439, %v1487
    %v1489 = vpop.f32.mrf.mxu0
    %v1490 = vadd.f32 %v1441, %v1489
    %1491 = vmatmul.bf16.gmra.mxu0 %v1207
    %v1492 = vpop.f32.mrf.mxu0
    %v1493 = vadd.f32 %v1444, %v1492
    %v1494 = vpop.f32.mrf.mxu0
    %v1495 = vadd.f32 %v1446, %v1494
    %1496 = vmatmul.bf16.gmra.mxu0 %v1210
    %v1497 = vpop.f32.mrf.mxu0
    %v1498 = vadd.f32 %v1449, %v1497
    %v1499 = vpop.f32.mrf.mxu0
    %v1500 = vadd.f32 %v1451, %v1499
    %1501 = vmatmul.bf16.gmra.mxu0 %v1213
    %v1502 = vpop.f32.mrf.mxu0
    %v1503 = vadd.f32 %v1454, %v1502
    %v1504 = vpop.f32.mrf.mxu0
    %v1505 = vadd.f32 %v1456, %v1504
    %1506 = vmatmul.bf16.gmra.mxu0 %v1216
    %v1507 = vpop.f32.mrf.mxu0
    %v1508 = vadd.f32 %v1459, %v1507
    %v1509 = vpop.f32.mrf.mxu0
    %v1510 = vadd.f32 %v1461, %v1509
    %1511 = vmatmul.bf16.gmra.mxu0 %v1219
    %v1512 = vpop.f32.mrf.mxu0
    %v1513 = vadd.f32 %v1464, %v1512
    %v1514 = vpop.f32.mrf.mxu0
    %v1515 = vadd.f32 %v1466, %v1514
    %1516 = vdwg.mxu0
    %1517 = vmatpush.bf16.msra.mxu0 %v1394
    %1518 = vmatpush.bf16.msra.mxu0 %v1393
    %1519 = vmatpush.bf16.msra.mxu0 %v1392
    %1520 = vmatpush.bf16.msra.mxu0 %v1391
    %1521 = vmatpush.bf16.msra.mxu0 %v1390
    %1522 = vmatpush.bf16.msra.mxu0 %v1389
    %1523 = vmatpush.bf16.msra.mxu0 %v1388
    %1524 = vmatpush.bf16.msra.mxu0 %v1387
    %1525 = vmatmul.bf16.gmra.mxu0 %v1199
    %v1526 = vpop.f32.mrf.mxu0
    %v1527 = vadd.f32 %v1478, %v1526
    %v1528 = vpop.f32.mrf.mxu0
    %v1529 = vadd.f32 %v1480, %v1528
    %1530 = vmatmul.bf16.gmra.mxu0 %v1202
    %v1531 = vpop.f32.mrf.mxu0
    %v1532 = vadd.f32 %v1483, %v1531
    %v1533 = vpop.f32.mrf.mxu0
    %v1534 = vadd.f32 %v1485, %v1533
    %1535 = vmatmul.bf16.gmra.mxu0 %v1205
    %v1536 = vpop.f32.mrf.mxu0
    %v1537 = vadd.f32 %v1488, %v1536
    %v1538 = vpop.f32.mrf.mxu0
    %v1539 = vadd.f32 %v1490, %v1538
    %1540 = vmatmul.bf16.gmra.mxu0 %v1208
    %v1541 = vpop.f32.mrf.mxu0
    %v1542 = vadd.f32 %v1493, %v1541
    %v1543 = vpop.f32.mrf.mxu0
    %v1544 = vadd.f32 %v1495, %v1543
    %1545 = vmatmul.bf16.gmra.mxu0 %v1211
    %v1546 = vpop.f32.mrf.mxu0
    %v1547 = vadd.f32 %v1498, %v1546
    %v1548 = vpop.f32.mrf.mxu0
    %v1549 = vadd.f32 %v1500, %v1548
    %1550 = vmatmul.bf16.gmra.mxu0 %v1214
    %v1551 = vpop.f32.mrf.mxu0
    %v1552 = vadd.f32 %v1503, %v1551
    %v1553 = vpop.f32.mrf.mxu0
    %v1554 = vadd.f32 %v1505, %v1553
    %1555 = vmatmul.bf16.gmra.mxu0 %v1217
    %v1556 = vpop.f32.mrf.mxu0
    %v1557 = vadd.f32 %v1508, %v1556
    %v1558 = vpop.f32.mrf.mxu0
    %v1559 = vadd.f32 %v1510, %v1558
    %1560 = vmatmul.bf16.gmra.mxu0 %v1220
    %v1561 = vpop.f32.mrf.mxu0
    %v1562 = vadd.f32 %v1513, %v1561
    %v1563 = vpop.f32.mrf.mxu0
    %v1564 = vadd.f32 %v1515, %v1563
    %1565 = vdwg.mxu0
    %v1566 = vmax.f32 %v1527, 0.0
    %v1567 = vmax.f32 %v1529, 0.0
    %v1568 = vmax.f32 %v1532, 0.0
    %v1569 = vmax.f32 %v1534, 0.0
    %v1570 = vmax.f32 %v1537, 0.0
    %v1571 = vmax.f32 %v1539, 0.0
    %v1572 = vmax.f32 %v1542, 0.0
    %v1573 = vmax.f32 %v1544, 0.0
    %v1574 = vmax.f32 %v1547, 0.0
    %v1575 = vmax.f32 %v1549, 0.0
    %v1576 = vmax.f32 %v1552, 0.0
    %v1577 = vmax.f32 %v1554, 0.0
    %v1578 = vmax.f32 %v1557, 0.0
    %v1579 = vmax.f32 %v1559, 0.0
    %v1580 = vmax.f32 %v1562, 0.0
    %v1581 = vmax.f32 %v1564, 0.0
    %v1582 = vadd.f32 %v1566, %v1567
    %v1583 = vadd.f32 %v1582, %v1568
    %v1584 = vadd.f32 %v1583, %v1569
    %v1585 = vadd.f32 %v1584, %v1570
    %v1586 = vadd.f32 %v1585, %v1571
    %v1587 = vadd.f32 %v1586, %v1572
    %v1588 = vadd.f32 %v1587, %v1573
    %v1589 = vadd.f32 %v1588, %v1574
    %v1590 = vadd.f32 %v1589, %v1575
    %v1591 = vadd.f32 %v1590, %v1576
    %v1592 = vadd.f32 %v1591, %v1577
    %v1593 = vadd.f32 %v1592, %v1578
    %v1594 = vadd.f32 %v1593, %v1579
    %v1595 = vadd.f32 %v1594, %v1580
    %v1596 = vadd.f32 %v1595, %v1581
    %v1597 = vrot.slane %v1596, 4
    %v1598 = vadd.f32 %v1596, %v1597
    %v1599 = vrot.slane %v1598, 2
    %v1600 = vadd.f32 %v1598, %v1599
    %v1601 = vrot.slane %v1600, 1
    %v1602 = vadd.f32 %v1600, %v1601
    %1603 = vmatpush.msra.mxu0 %v90
    %1604 = vmatpush.msra.mxu0 %v89
    %1605 = vmatpush.msra.mxu0 %v88
    %1606 = vmatpush.msra.mxu0 %v87
    %1607 = vmatpush.msra.mxu0 %v86
    %1608 = vmatpush.msra.mxu0 %v85
    %1609 = vmatpush.msra.mxu0 %v84
    %1610 = vmatpush.msra.mxu0 %v83
    %1611 = vmatpush.msra.mxu0 %v82
    %1612 = vmatpush.msra.mxu0 %v81
    %1613 = vmatpush.msra.mxu0 %v80
    %1614 = vmatpush.msra.mxu0 %v79
    %1615 = vmatpush.msra.mxu0 %v78
    %1616 = vmatpush.msra.mxu0 %v77
    %1617 = vmatpush.msra.mxu0 %v76
    %1618 = vmatpush.msra.mxu0 %v75
    %1619 = vmatmul.f32.gmra.mxu0 %v1602
    %v1620 = vpop.f32.mrf.mxu0
    %v1621 = vadd.f32 0.0, %v1620
    %1622 = vdwg.mxu0
    %v1623 = vperm.slane %v1621, 0
    %v1624 = vsub.f32 %v1566, %v1623
    %v1625 = vsub.f32 %v1567, %v1623
    %v1626 = vsub.f32 %v1568, %v1623
    %v1627 = vsub.f32 %v1569, %v1623
    %v1628 = vsub.f32 %v1570, %v1623
    %v1629 = vsub.f32 %v1571, %v1623
    %v1630 = vsub.f32 %v1572, %v1623
    %v1631 = vsub.f32 %v1573, %v1623
    %v1632 = vsub.f32 %v1574, %v1623
    %v1633 = vsub.f32 %v1575, %v1623
    %v1634 = vsub.f32 %v1576, %v1623
    %v1635 = vsub.f32 %v1577, %v1623
    %v1636 = vsub.f32 %v1578, %v1623
    %v1637 = vsub.f32 %v1579, %v1623
    %v1638 = vsub.f32 %v1580, %v1623
    %v1639 = vsub.f32 %v1581, %v1623
    %v1640 = vmul.f32 %v1624, %v1624
    %v1641 = vmul.f32 %v1625, %v1625
    %v1642 = vmul.f32 %v1626, %v1626
    %v1643 = vmul.f32 %v1627, %v1627
    %v1644 = vmul.f32 %v1628, %v1628
    %v1645 = vmul.f32 %v1629, %v1629
    %v1646 = vmul.f32 %v1630, %v1630
    %v1647 = vmul.f32 %v1631, %v1631
    %v1648 = vmul.f32 %v1632, %v1632
    %v1649 = vmul.f32 %v1633, %v1633
    %v1650 = vmul.f32 %v1634, %v1634
    %v1651 = vmul.f32 %v1635, %v1635
    %v1652 = vmul.f32 %v1636, %v1636
    %v1653 = vmul.f32 %v1637, %v1637
    %v1654 = vmul.f32 %v1638, %v1638
    %v1655 = vmul.f32 %v1639, %v1639
    %v1656 = vadd.f32 %v1640, %v1641
    %v1657 = vadd.f32 %v1656, %v1642
    %v1658 = vadd.f32 %v1657, %v1643
    %v1659 = vadd.f32 %v1658, %v1644
    %v1660 = vadd.f32 %v1659, %v1645
    %v1661 = vadd.f32 %v1660, %v1646
    %v1662 = vadd.f32 %v1661, %v1647
    %v1663 = vadd.f32 %v1662, %v1648
    %v1664 = vadd.f32 %v1663, %v1649
    %v1665 = vadd.f32 %v1664, %v1650
    %v1666 = vadd.f32 %v1665, %v1651
    %v1667 = vadd.f32 %v1666, %v1652
    %v1668 = vadd.f32 %v1667, %v1653
    %v1669 = vadd.f32 %v1668, %v1654
    %v1670 = vadd.f32 %v1669, %v1655
    %v1671 = vrot.slane %v1670, 4
    %v1672 = vadd.f32 %v1670, %v1671
    %v1673 = vrot.slane %v1672, 2
    %v1674 = vadd.f32 %v1672, %v1673
    %v1675 = vrot.slane %v1674, 1
    %v1676 = vadd.f32 %v1674, %v1675
    %s1677 = scalar_lea.vmem %s4, 2
    %v1678 = vld [vmem:[%s1677] sm:$0x1]
    %1679 = vmatpush.msra.mxu0 %v90
    %1680 = vmatpush.msra.mxu0 %v89
    %1681 = vmatpush.msra.mxu0 %v88
    %1682 = vmatpush.msra.mxu0 %v87
    %1683 = vmatpush.msra.mxu0 %v86
    %1684 = vmatpush.msra.mxu0 %v85
    %1685 = vmatpush.msra.mxu0 %v84
    %1686 = vmatpush.msra.mxu0 %v83
    %1687 = vmatpush.msra.mxu0 %v82
    %1688 = vmatpush.msra.mxu0 %v81
    %1689 = vmatpush.msra.mxu0 %v80
    %1690 = vmatpush.msra.mxu0 %v79
    %1691 = vmatpush.msra.mxu0 %v78
    %1692 = vmatpush.msra.mxu0 %v77
    %1693 = vmatpush.msra.mxu0 %v76
    %1694 = vmatpush.msra.mxu0 %v75
    %1695 = vmatmul.f32.gmra.mxu0 %v1676
    %v1696 = vpop.f32.mrf.mxu0
    %v1697 = vadd.f32 1e-05, %v1696
    %1698 = vdwg.mxu0
    %v1699 = vrsqrt.pop %v1697
    %v1700 = vmul.f32 %v1699, %v1697
    %v1701 = vmul.f32 %v1700, %v1699
    %v1702 = vmul.f32 0.5, %v1701
    %v1703 = vsub.f32 1.5, %v1702
    %v1704 = vmul.f32 %v1699, %v1703
    %vm1705 = vweird.f32 %v1697
    %vm1706 = vweird.f32 %v1699
    %vm1707 = vmor %vm1705, %vm1706
    %v1708 = vsel %vm1707, %v1699, %v1704
    %v1709 = vmul.f32 %v1678, %v1708
    %v1711 = vperm.slane %v1709, 0
    %v1713 = vmul.f32 %v1624, %v1711
    %v1714 = vmul.f32 %v1625, %v1711
    %v1715 = vmul.f32 %v1626, %v1711
    %v1716 = vmul.f32 %v1627, %v1711
    %v1717 = vmul.f32 %v1628, %v1711
    %v1718 = vmul.f32 %v1629, %v1711
    %v1719 = vmul.f32 %v1630, %v1711
    %v1720 = vmul.f32 %v1631, %v1711
    %v1721 = vmul.f32 %v1632, %v1711
    %v1722 = vmul.f32 %v1633, %v1711
    %v1723 = vmul.f32 %v1634, %v1711
    %v1724 = vmul.f32 %v1635, %v1711
    %v1725 = vmul.f32 %v1636, %v1711
    %v1726 = vmul.f32 %v1637, %v1711
    %v1727 = vmul.f32 %v1638, %v1711
    %v1728 = vmul.f32 %v1639, %v1711
    %s1729 = scalar_lea.vmem [#allocation5], 2
    %v1730 = vld [vmem:[%s1729] sm:$0x1]
    %v1732 = vperm.slane %v1730, 0
    %v1734 = vadd.f32 %v1713, %v1732
    %v1735 = vadd.f32 %v1714, %v1732
    %v1736 = vadd.f32 %v1715, %v1732
    %v1737 = vadd.f32 %v1716, %v1732
    %v1738 = vadd.f32 %v1717, %v1732
    %v1739 = vadd.f32 %v1718, %v1732
    %v1740 = vadd.f32 %v1719, %v1732
    %v1741 = vadd.f32 %v1720, %v1732
    %v1742 = vadd.f32 %v1721, %v1732
    %v1743 = vadd.f32 %v1722, %v1732
    %v1744 = vadd.f32 %v1723, %v1732
    %v1745 = vadd.f32 %v1724, %v1732
    %v1746 = vadd.f32 %v1725, %v1732
    %v1747 = vadd.f32 %v1726, %v1732
    %v1748 = vadd.f32 %v1727, %v1732
    %v1749 = vadd.f32 %v1728, %v1732
    %v1750 = vrot.slane %v1734, 7
    %v1751 = vrot.slane %v1735, 7
    %v1752 = vrot.slane %v1736, 7
    %v1753 = vrot.slane %v1737, 7
    %v1754 = vrot.slane %v1738, 7
    %v1755 = vrot.slane %v1739, 7
    %v1756 = vrot.slane %v1740, 7
    %v1757 = vrot.slane %v1741, 7
    %v1758 = vrot.slane %v1742, 7
    %v1759 = vrot.slane %v1743, 7
    %v1760 = vrot.slane %v1744, 7
    %v1761 = vrot.slane %v1745, 7
    %v1762 = vrot.slane %v1746, 7
    %v1763 = vrot.slane %v1747, 7
    %v1764 = vrot.slane %v1748, 7
    %v1765 = vrot.slane %v1749, 7
    %v1766 = vsel %vm308, %v1764, %v1765
    %v1767 = vsel %vm308, %v1763, %v1764
    %v1768 = vsel %vm308, %v1762, %v1763
    %v1769 = vsel %vm308, %v1761, %v1762
    %v1770 = vsel %vm308, %v1760, %v1761
    %v1771 = vsel %vm308, %v1759, %v1760
    %v1772 = vsel %vm308, %v1758, %v1759
    %v1773 = vsel %vm308, %v1757, %v1758
    %v1774 = vsel %vm308, %v1756, %v1757
    %v1775 = vsel %vm308, %v1755, %v1756
    %v1776 = vsel %vm308, %v1754, %v1755
    %v1777 = vsel %vm308, %v1753, %v1754
    %v1778 = vsel %vm308, %v1752, %v1753
    %v1779 = vsel %vm308, %v1751, %v1752
    %v1780 = vsel %vm308, %v1750, %v1751
    %v1781 = vsel %vm308, %v1765, %v1750
    %v1782 = vmul.f32 %v1781, %v328
    %v1783 = vmul.f32 %v1780, %v333
    %v1784 = vmul.f32 %v1779, %v338
    %v1785 = vmul.f32 %v1778, %v343
    %v1786 = vmul.f32 %v1777, %v348
    %v1787 = vmul.f32 %v1776, %v353
    %v1788 = vmul.f32 %v1775, %v358
    %v1789 = vmul.f32 %v1774, %v363
    %v1790 = vmul.f32 %v1773, %v368
    %v1791 = vmul.f32 %v1772, %v373
    %v1792 = vmul.f32 %v1771, %v378
    %v1793 = vmul.f32 %v1770, %v383
    %v1794 = vmul.f32 %v1769, %v388
    %v1795 = vmul.f32 %v1768, %v393
    %v1796 = vmul.f32 %v1767, %v398
    %v1797 = vmul.f32 %v1766, %v403
    %v1798 = vrot.slane %v1734, 1
    %v1799 = vrot.slane %v1735, 1
    %v1800 = vrot.slane %v1736, 1
    %v1801 = vrot.slane %v1737, 1
    %v1802 = vrot.slane %v1738, 1
    %v1803 = vrot.slane %v1739, 1
    %v1804 = vrot.slane %v1740, 1
    %v1805 = vrot.slane %v1741, 1
    %v1806 = vrot.slane %v1742, 1
    %v1807 = vrot.slane %v1743, 1
    %v1808 = vrot.slane %v1744, 1
    %v1809 = vrot.slane %v1745, 1
    %v1810 = vrot.slane %v1746, 1
    %v1811 = vrot.slane %v1747, 1
    %v1812 = vrot.slane %v1748, 1
    %v1813 = vrot.slane %v1749, 1
    %v1814 = vsel %vm437, %v1812, %v1813
    %v1815 = vsel %vm437, %v1811, %v1812
    %v1816 = vsel %vm437, %v1810, %v1811
    %v1817 = vsel %vm437, %v1809, %v1810
    %v1818 = vsel %vm437, %v1808, %v1809
    %v1819 = vsel %vm437, %v1807, %v1808
    %v1820 = vsel %vm437, %v1806, %v1807
    %v1821 = vsel %vm437, %v1805, %v1806
    %v1822 = vsel %vm437, %v1804, %v1805
    %v1823 = vsel %vm437, %v1803, %v1804
    %v1824 = vsel %vm437, %v1802, %v1803
    %v1825 = vsel %vm437, %v1801, %v1802
    %v1826 = vsel %vm437, %v1800, %v1801
    %v1827 = vsel %vm437, %v1799, %v1800
    %v1828 = vsel %vm437, %v1798, %v1799
    %v1829 = vsel %vm437, %v1813, %v1798
    %v1830 = vmul.f32 %v1828, %v457
    %v1831 = vmul.f32 %v1827, %v462
    %v1832 = vmul.f32 %v1826, %v467
    %v1833 = vmul.f32 %v1825, %v472
    %v1834 = vmul.f32 %v1824, %v477
    %v1835 = vmul.f32 %v1823, %v482
    %v1836 = vmul.f32 %v1822, %v487
    %v1837 = vmul.f32 %v1821, %v492
    %v1838 = vmul.f32 %v1820, %v497
    %v1839 = vmul.f32 %v1819, %v502
    %v1840 = vmul.f32 %v1818, %v507
    %v1841 = vmul.f32 %v1817, %v512
    %v1842 = vmul.f32 %v1816, %v517
    %v1843 = vmul.f32 %v1815, %v522
    %v1844 = vmul.f32 %v1814, %v527
    %v1845 = vmul.f32 %v1829, %v532
    %v1846 = vpack.c.bf16 %v1783, %v1782
    %v1847 = vpack.c.bf16 %v1735, %v1734
    %v1848 = vpack.c.bf16 %v1831, %v1830
    %v1849 = vpack.c.bf16 %v1785, %v1784
    %v1850 = vpack.c.bf16 %v1737, %v1736
    %v1851 = vpack.c.bf16 %v1833, %v1832
    %v1852 = vpack.c.bf16 %v1787, %v1786
    %v1853 = vpack.c.bf16 %v1739, %v1738
    %v1854 = vpack.c.bf16 %v1835, %v1834
    %v1855 = vpack.c.bf16 %v1789, %v1788
    %v1856 = vpack.c.bf16 %v1741, %v1740
    %v1857 = vpack.c.bf16 %v1837, %v1836
    %v1858 = vpack.c.bf16 %v1791, %v1790
    %v1859 = vpack.c.bf16 %v1743, %v1742
    %v1860 = vpack.c.bf16 %v1839, %v1838
    %v1861 = vpack.c.bf16 %v1793, %v1792
    %v1862 = vpack.c.bf16 %v1745, %v1744
    %v1863 = vpack.c.bf16 %v1841, %v1840
    %v1864 = vpack.c.bf16 %v1795, %v1794
    %v1865 = vpack.c.bf16 %v1747, %v1746
    %v1866 = vpack.c.bf16 %v1843, %v1842
    %v1867 = vpack.c.bf16 %v1797, %v1796
    %v1868 = vpack.c.bf16 %v1749, %v1748
    %v1869 = vpack.c.bf16 %v1845, %v1844
    %s1870 = scalar_lea.vmem [#allocation2], 384
    %v1871 = vld [vmem:[%s1870] sm:$0xf]
    %v1872 = vld [vmem:[%s1870 + $0x4] sm:$0xf]
    %v1873 = vld [vmem:[%s1870 + $0x8] sm:$0xf]
    %v1874 = vld [vmem:[%s1870 + $0xc] sm:$0xf]
    %v1875 = vld [vmem:[%s1870 + $0x10] sm:$0xf]
    %v1876 = vld [vmem:[%s1870 + $0x14] sm:$0xf]
    %v1877 = vld [vmem:[%s1870 + $0x18] sm:$0xf]
    %v1878 = vld [vmem:[%s1870 + $0x1c] sm:$0xf]
    %v1879 = vld [vmem:[%s1870 + $0x20] sm:$0xf]
    %v1880 = vld [vmem:[%s1870 + $0x24] sm:$0xf]
    %v1881 = vld [vmem:[%s1870 + $0x28] sm:$0xf]
    %v1882 = vld [vmem:[%s1870 + $0x2c] sm:$0xf]
    %v1883 = vld [vmem:[%s1870 + $0x30] sm:$0xf]
    %v1884 = vld [vmem:[%s1870 + $0x34] sm:$0xf]
    %v1885 = vld [vmem:[%s1870 + $0x38] sm:$0xf]
    %v1886 = vld [vmem:[%s1870 + $0x3c] sm:$0xf]
    %v1887 = vld [vmem:[%s1870 + $0x40] sm:$0xf]
    %v1888 = vld [vmem:[%s1870 + $0x44] sm:$0xf]
    %v1889 = vld [vmem:[%s1870 + $0x48] sm:$0xf]
    %v1890 = vld [vmem:[%s1870 + $0x4c] sm:$0xf]
    %v1891 = vld [vmem:[%s1870 + $0x50] sm:$0xf]
    %v1892 = vld [vmem:[%s1870 + $0x54] sm:$0xf]
    %v1893 = vld [vmem:[%s1870 + $0x58] sm:$0xf]
    %v1894 = vld [vmem:[%s1870 + $0x5c] sm:$0xf]
    %v1895 = vld [vmem:[%s1870 + $0x60] sm:$0xf]
    %v1896 = vld [vmem:[%s1870 + $0x64] sm:$0xf]
    %v1897 = vld [vmem:[%s1870 + $0x68] sm:$0xf]
    %v1898 = vld [vmem:[%s1870 + $0x6c] sm:$0xf]
    %v1899 = vld [vmem:[%s1870 + $0x70] sm:$0xf]
    %v1900 = vld [vmem:[%s1870 + $0x74] sm:$0xf]
    %v1901 = vld [vmem:[%s1870 + $0x78] sm:$0xf]
    %v1902 = vld [vmem:[%s1870 + $0x7c] sm:$0xf]
    %v1903 = vld [vmem:[%s1870 + $0x80] sm:$0xf]
    %v1904 = vld [vmem:[%s1870 + $0x84] sm:$0xf]
    %v1905 = vld [vmem:[%s1870 + $0x88] sm:$0xf]
    %v1906 = vld [vmem:[%s1870 + $0x8c] sm:$0xf]
    %v1907 = vld [vmem:[%s1870 + $0x90] sm:$0xf]
    %v1908 = vld [vmem:[%s1870 + $0x94] sm:$0xf]
    %v1909 = vld [vmem:[%s1870 + $0x98] sm:$0xf]
    %v1910 = vld [vmem:[%s1870 + $0x9c] sm:$0xf]
    %v1911 = vld [vmem:[%s1870 + $0xa0] sm:$0xf]
    %v1912 = vld [vmem:[%s1870 + $0xa4] sm:$0xf]
    %v1913 = vld [vmem:[%s1870 + $0xa8] sm:$0xf]
    %v1914 = vld [vmem:[%s1870 + $0xac] sm:$0xf]
    %v1915 = vld [vmem:[%s1870 + $0xb0] sm:$0xf]
    %v1916 = vld [vmem:[%s1870 + $0xb4] sm:$0xf]
    %v1917 = vld [vmem:[%s1870 + $0xb8] sm:$0xf]
    %v1918 = vld [vmem:[%s1870 + $0xbc] sm:$0xf]
    %s1919 = scalar_lea.vmem %s6, 2
    %v1920 = vld [vmem:[%s1919] sm:$0x1]
    %v1922 = vperm.slane %v1920, 0
    %v1972 = vunpack.c.l.b16 %v1871
    %v1973 = vunpack.c.l.b16 %v1872
    %v1974 = vunpack.c.l.b16 %v1873
    %v1975 = vunpack.c.l.b16 %v1874
    %v1976 = vunpack.c.l.b16 %v1875
    %v1977 = vunpack.c.l.b16 %v1876
    %v1978 = vunpack.c.l.b16 %v1877
    %v1979 = vunpack.c.l.b16 %v1878
    %v1980 = vunpack.c.l.b16 %v1879
    %v1981 = vunpack.c.l.b16 %v1880
    %v1982 = vunpack.c.l.b16 %v1881
    %v1983 = vunpack.c.l.b16 %v1882
    %v1984 = vunpack.c.l.b16 %v1883
    %v1985 = vunpack.c.l.b16 %v1884
    %v1986 = vunpack.c.l.b16 %v1885
    %v1987 = vunpack.c.l.b16 %v1886
    %v1988 = vunpack.c.l.b16 %v1887
    %v1989 = vunpack.c.l.b16 %v1888
    %v1990 = vunpack.c.l.b16 %v1889
    %v1991 = vunpack.c.l.b16 %v1890
    %v1992 = vunpack.c.l.b16 %v1891
    %v1993 = vunpack.c.l.b16 %v1892
    %v1994 = vunpack.c.l.b16 %v1893
    %v1995 = vunpack.c.l.b16 %v1894
    %v1996 = vunpack.c.l.b16 %v1895
    %v1997 = vunpack.c.l.b16 %v1896
    %v1998 = vunpack.c.l.b16 %v1897
    %v1999 = vunpack.c.l.b16 %v1898
    %v2000 = vunpack.c.l.b16 %v1899
    %v2001 = vunpack.c.l.b16 %v1900
    %v2002 = vunpack.c.l.b16 %v1901
    %v2003 = vunpack.c.l.b16 %v1902
    %v2004 = vunpack.c.l.b16 %v1903
    %v2005 = vunpack.c.l.b16 %v1904
    %v2006 = vunpack.c.l.b16 %v1905
    %v2007 = vunpack.c.l.b16 %v1906
    %v2008 = vunpack.c.l.b16 %v1907
    %v2009 = vunpack.c.l.b16 %v1908
    %v2010 = vunpack.c.l.b16 %v1909
    %v2011 = vunpack.c.l.b16 %v1910
    %v2012 = vunpack.c.l.b16 %v1911
    %v2013 = vunpack.c.l.b16 %v1912
    %v2014 = vunpack.c.l.b16 %v1913
    %v2015 = vunpack.c.l.b16 %v1914
    %v2016 = vunpack.c.l.b16 %v1915
    %v2017 = vunpack.c.l.b16 %v1916
    %v2018 = vunpack.c.l.b16 %v1917
    %v2019 = vunpack.c.l.b16 %v1918
    %v2020 = vpack.c.b16 %v1973, %v1972
    %v2021 = vpack.c.b16 %v1975, %v1974
    %v2022 = vpack.c.b16 %v1977, %v1976
    %v2023 = vpack.c.b16 %v1979, %v1978
    %v2024 = vpack.c.b16 %v1981, %v1980
    %v2025 = vpack.c.b16 %v1983, %v1982
    %v2026 = vpack.c.b16 %v1985, %v1984
    %v2027 = vpack.c.b16 %v1987, %v1986
    %v2028 = vpack.c.b16 %v1989, %v1988
    %v2029 = vpack.c.b16 %v1991, %v1990
    %v2030 = vpack.c.b16 %v1993, %v1992
    %v2031 = vpack.c.b16 %v1995, %v1994
    %v2032 = vpack.c.b16 %v1997, %v1996
    %v2033 = vpack.c.b16 %v1999, %v1998
    %v2034 = vpack.c.b16 %v2001, %v2000
    %v2035 = vpack.c.b16 %v2003, %v2002
    %v2036 = vpack.c.b16 %v2005, %v2004
    %v2037 = vpack.c.b16 %v2007, %v2006
    %v2038 = vpack.c.b16 %v2009, %v2008
    %v2039 = vpack.c.b16 %v2011, %v2010
    %v2040 = vpack.c.b16 %v2013, %v2012
    %v2041 = vpack.c.b16 %v2015, %v2014
    %v2042 = vpack.c.b16 %v2017, %v2016
    %v2043 = vpack.c.b16 %v2019, %v2018
    %2068 = vmatpush.bf16.msra.mxu0 %v2027
    %2069 = vmatpush.bf16.msra.mxu0 %v2026
    %2070 = vmatpush.bf16.msra.mxu0 %v2025
    %2071 = vmatpush.bf16.msra.mxu0 %v2024
    %2072 = vmatpush.bf16.msra.mxu0 %v2023
    %2073 = vmatpush.bf16.msra.mxu0 %v2022
    %2074 = vmatpush.bf16.msra.mxu0 %v2021
    %2075 = vmatpush.bf16.msra.mxu0 %v2020
    %2076 = vmatmul.bf16.gmra.mxu0 %v1846
    %v2077 = vpop.f32.mrf.mxu0
    %v2078 = vadd.f32 %v1922, %v2077
    %v2079 = vpop.f32.mrf.mxu0
    %v2080 = vadd.f32 %v1922, %v2079
    %2081 = vmatmul.bf16.gmra.mxu0 %v1849
    %v2082 = vpop.f32.mrf.mxu0
    %v2083 = vadd.f32 %v1922, %v2082
    %v2084 = vpop.f32.mrf.mxu0
    %v2085 = vadd.f32 %v1922, %v2084
    %2086 = vmatmul.bf16.gmra.mxu0 %v1852
    %v2087 = vpop.f32.mrf.mxu0
    %v2088 = vadd.f32 %v1922, %v2087
    %v2089 = vpop.f32.mrf.mxu0
    %v2090 = vadd.f32 %v1922, %v2089
    %2091 = vmatmul.bf16.gmra.mxu0 %v1855
    %v2092 = vpop.f32.mrf.mxu0
    %v2093 = vadd.f32 %v1922, %v2092
    %v2094 = vpop.f32.mrf.mxu0
    %v2095 = vadd.f32 %v1922, %v2094
    %2096 = vmatmul.bf16.gmra.mxu0 %v1858
    %v2097 = vpop.f32.mrf.mxu0
    %v2098 = vadd.f32 %v1922, %v2097
    %v2099 = vpop.f32.mrf.mxu0
    %v2100 = vadd.f32 %v1922, %v2099
    %2101 = vmatmul.bf16.gmra.mxu0 %v1861
    %v2102 = vpop.f32.mrf.mxu0
    %v2103 = vadd.f32 %v1922, %v2102
    %v2104 = vpop.f32.mrf.mxu0
    %v2105 = vadd.f32 %v1922, %v2104
    %2106 = vmatmul.bf16.gmra.mxu0 %v1864
    %v2107 = vpop.f32.mrf.mxu0
    %v2108 = vadd.f32 %v1922, %v2107
    %v2109 = vpop.f32.mrf.mxu0
    %v2110 = vadd.f32 %v1922, %v2109
    %2111 = vmatmul.bf16.gmra.mxu0 %v1867
    %v2112 = vpop.f32.mrf.mxu0
    %v2113 = vadd.f32 %v1922, %v2112
    %v2114 = vpop.f32.mrf.mxu0
    %v2115 = vadd.f32 %v1922, %v2114
    %2116 = vdwg.mxu0
    %2117 = vmatpush.bf16.msra.mxu0 %v2035
    %2118 = vmatpush.bf16.msra.mxu0 %v2034
    %2119 = vmatpush.bf16.msra.mxu0 %v2033
    %2120 = vmatpush.bf16.msra.mxu0 %v2032
    %2121 = vmatpush.bf16.msra.mxu0 %v2031
    %2122 = vmatpush.bf16.msra.mxu0 %v2030
    %2123 = vmatpush.bf16.msra.mxu0 %v2029
    %2124 = vmatpush.bf16.msra.mxu0 %v2028
    %2125 = vmatmul.bf16.gmra.mxu0 %v1847
    %v2126 = vpop.f32.mrf.mxu0
    %v2127 = vadd.f32 %v2078, %v2126
    %v2128 = vpop.f32.mrf.mxu0
    %v2129 = vadd.f32 %v2080, %v2128
    %2130 = vmatmul.bf16.gmra.mxu0 %v1850
    %v2131 = vpop.f32.mrf.mxu0
    %v2132 = vadd.f32 %v2083, %v2131
    %v2133 = vpop.f32.mrf.mxu0
    %v2134 = vadd.f32 %v2085, %v2133
    %2135 = vmatmul.bf16.gmra.mxu0 %v1853
    %v2136 = vpop.f32.mrf.mxu0
    %v2137 = vadd.f32 %v2088, %v2136
    %v2138 = vpop.f32.mrf.mxu0
    %v2139 = vadd.f32 %v2090, %v2138
    %2140 = vmatmul.bf16.gmra.mxu0 %v1856
    %v2141 = vpop.f32.mrf.mxu0
    %v2142 = vadd.f32 %v2093, %v2141
    %v2143 = vpop.f32.mrf.mxu0
    %v2144 = vadd.f32 %v2095, %v2143
    %2145 = vmatmul.bf16.gmra.mxu0 %v1859
    %v2146 = vpop.f32.mrf.mxu0
    %v2147 = vadd.f32 %v2098, %v2146
    %v2148 = vpop.f32.mrf.mxu0
    %v2149 = vadd.f32 %v2100, %v2148
    %2150 = vmatmul.bf16.gmra.mxu0 %v1862
    %v2151 = vpop.f32.mrf.mxu0
    %v2152 = vadd.f32 %v2103, %v2151
    %v2153 = vpop.f32.mrf.mxu0
    %v2154 = vadd.f32 %v2105, %v2153
    %2155 = vmatmul.bf16.gmra.mxu0 %v1865
    %v2156 = vpop.f32.mrf.mxu0
    %v2157 = vadd.f32 %v2108, %v2156
    %v2158 = vpop.f32.mrf.mxu0
    %v2159 = vadd.f32 %v2110, %v2158
    %2160 = vmatmul.bf16.gmra.mxu0 %v1868
    %v2161 = vpop.f32.mrf.mxu0
    %v2162 = vadd.f32 %v2113, %v2161
    %v2163 = vpop.f32.mrf.mxu0
    %v2164 = vadd.f32 %v2115, %v2163
    %2165 = vdwg.mxu0
    %2166 = vmatpush.bf16.msra.mxu0 %v2043
    %2167 = vmatpush.bf16.msra.mxu0 %v2042
    %2168 = vmatpush.bf16.msra.mxu0 %v2041
    %2169 = vmatpush.bf16.msra.mxu0 %v2040
    %2170 = vmatpush.bf16.msra.mxu0 %v2039
    %2171 = vmatpush.bf16.msra.mxu0 %v2038
    %2172 = vmatpush.bf16.msra.mxu0 %v2037
    %2173 = vmatpush.bf16.msra.mxu0 %v2036
    %2174 = vmatmul.bf16.gmra.mxu0 %v1848
    %v2175 = vpop.f32.mrf.mxu0
    %v2176 = vadd.f32 %v2127, %v2175
    %v2177 = vpop.f32.mrf.mxu0
    %v2178 = vadd.f32 %v2129, %v2177
    %2179 = vmatmul.bf16.gmra.mxu0 %v1851
    %v2180 = vpop.f32.mrf.mxu0
    %v2181 = vadd.f32 %v2132, %v2180
    %v2182 = vpop.f32.mrf.mxu0
    %v2183 = vadd.f32 %v2134, %v2182
    %2184 = vmatmul.bf16.gmra.mxu0 %v1854
    %v2185 = vpop.f32.mrf.mxu0
    %v2186 = vadd.f32 %v2137, %v2185
    %v2187 = vpop.f32.mrf.mxu0
    %v2188 = vadd.f32 %v2139, %v2187
    %2189 = vmatmul.bf16.gmra.mxu0 %v1857
    %v2190 = vpop.f32.mrf.mxu0
    %v2191 = vadd.f32 %v2142, %v2190
    %v2192 = vpop.f32.mrf.mxu0
    %v2193 = vadd.f32 %v2144, %v2192
    %2194 = vmatmul.bf16.gmra.mxu0 %v1860
    %v2195 = vpop.f32.mrf.mxu0
    %v2196 = vadd.f32 %v2147, %v2195
    %v2197 = vpop.f32.mrf.mxu0
    %v2198 = vadd.f32 %v2149, %v2197
    %2199 = vmatmul.bf16.gmra.mxu0 %v1863
    %v2200 = vpop.f32.mrf.mxu0
    %v2201 = vadd.f32 %v2152, %v2200
    %v2202 = vpop.f32.mrf.mxu0
    %v2203 = vadd.f32 %v2154, %v2202
    %2204 = vmatmul.bf16.gmra.mxu0 %v1866
    %v2205 = vpop.f32.mrf.mxu0
    %v2206 = vadd.f32 %v2157, %v2205
    %v2207 = vpop.f32.mrf.mxu0
    %v2208 = vadd.f32 %v2159, %v2207
    %2209 = vmatmul.bf16.gmra.mxu0 %v1869
    %v2210 = vpop.f32.mrf.mxu0
    %v2211 = vadd.f32 %v2162, %v2210
    %v2212 = vpop.f32.mrf.mxu0
    %v2213 = vadd.f32 %v2164, %v2212
    %2214 = vdwg.mxu0
    %v2215 = vmax.f32 %v2176, 0.0
    %v2216 = vmax.f32 %v2178, 0.0
    %v2217 = vmax.f32 %v2181, 0.0
    %v2218 = vmax.f32 %v2183, 0.0
    %v2219 = vmax.f32 %v2186, 0.0
    %v2220 = vmax.f32 %v2188, 0.0
    %v2221 = vmax.f32 %v2191, 0.0
    %v2222 = vmax.f32 %v2193, 0.0
    %v2223 = vmax.f32 %v2196, 0.0
    %v2224 = vmax.f32 %v2198, 0.0
    %v2225 = vmax.f32 %v2201, 0.0
    %v2226 = vmax.f32 %v2203, 0.0
    %v2227 = vmax.f32 %v2206, 0.0
    %v2228 = vmax.f32 %v2208, 0.0
    %v2229 = vmax.f32 %v2211, 0.0
    %v2230 = vmax.f32 %v2213, 0.0
    %v2231 = vadd.f32 %v2215, %v59
    %v2232 = vadd.f32 %v2216, %v60
    %v2233 = vadd.f32 %v2217, %v61
    %v2234 = vadd.f32 %v2218, %v62
    %v2235 = vadd.f32 %v2219, %v63
    %v2236 = vadd.f32 %v2220, %v64
    %v2237 = vadd.f32 %v2221, %v65
    %v2238 = vadd.f32 %v2222, %v66
    %v2239 = vadd.f32 %v2223, %v67
    %v2240 = vadd.f32 %v2224, %v68
    %v2241 = vadd.f32 %v2225, %v69
    %v2242 = vadd.f32 %v2226, %v70
    %v2243 = vadd.f32 %v2227, %v71
    %v2244 = vadd.f32 %v2228, %v72
    %v2245 = vadd.f32 %v2229, %v73
    %v2246 = vadd.f32 %v2230, %v74
    %2247 = vst [vmem:[#allocation7] sm:$0xff] %v2231
    %2248 = vst [vmem:[#allocation7 + $0x8] sm:$0xff] %v2232
    %2249 = vst [vmem:[#allocation7 + $0x10] sm:$0xff] %v2233
    %2250 = vst [vmem:[#allocation7 + $0x18] sm:$0xff] %v2234
    %2251 = vst [vmem:[#allocation7 + $0x20] sm:$0xff] %v2235
    %2252 = vst [vmem:[#allocation7 + $0x28] sm:$0xff] %v2236
    %2253 = vst [vmem:[#allocation7 + $0x30] sm:$0xff] %v2237
    %2254 = vst [vmem:[#allocation7 + $0x38] sm:$0xff] %v2238
    %2255 = vst [vmem:[#allocation7 + $0x40] sm:$0xff] %v2239
    %2256 = vst [vmem:[#allocation7 + $0x48] sm:$0xff] %v2240
    %2257 = vst [vmem:[#allocation7 + $0x50] sm:$0xff] %v2241
    %2258 = vst [vmem:[#allocation7 + $0x58] sm:$0xff] %v2242
    %2259 = vst [vmem:[#allocation7 + $0x60] sm:$0xff] %v2243
    %2260 = vst [vmem:[#allocation7 + $0x68] sm:$0xff] %v2244
    %2261 = vst [vmem:[#allocation7 + $0x70] sm:$0xff] %v2245
    %2262 = vst [vmem:[#allocation7 + $0x78] sm:$0xff] %v2246
    // Predicated region
    $region38: #{tpu_custom_call.1} parent=1 // pred_check
      _
    $region39: #{tpu_custom_call.1} parent=1 // pred_check_branch
      %2264 = sbr.rel (0) target = $region41
    $region40: #{tpu_custom_call.1} parent=1 // pred_region
      %2266 = vsyncadd [#allocation4], 0
      %s2267 = sshll.u32 [#allocation7], 4
      %s2268 = int_to_ptr.vmem [resolvable:$true] %s2267
      %s2269 = sshll.u32 %s7, 4
      %s2270 = int_to_ptr.hbm [resolvable:$true] %s2269
      %2275 = dma.vmem_to_hbm [thread:$0]  %s2268, 2048, %s2270, [#allocation4], 128, 128, 8
    $region41: #{tpu_custom_call.1} parent=1 // pred_fallthru
      _
    // Predicated region
    $region42: #{tpu_custom_call.1} parent=1 // pred_check
      _
    $region43: #{tpu_custom_call.1} parent=1 // pred_check_branch
      %2277 = sbr.rel (0) target = $region45
    $region44: #{tpu_custom_call.1} parent=1 // pred_region
      %2279 = dma.done [#allocation4], 2048
    $region45: #{tpu_custom_call.1} parent=1 // pred_fallthru
      _
    %2280 = vsyncpa [#allocation3], 1
    %2281 = vsyncpa [#allocation6], 1
    %2282 = vsyncpa [#allocation4], 1

</llo_original>
